<compile_context>
chip_gen: v7x
topology: tpu7x:2x2x1
jax: 0.10.0
libtpu: 0.0.40
codegen_flags: <defaults>
</compile_context>

<pallas_src>
import functools

import jax
import jax.numpy as jnp
from jax.experimental import pallas as pl
from jax.experimental.pallas import tpu as pltpu


def _round_up(n, m):
    return ((n + m - 1) // m) * m


def _ltc_kernel(xw_ref, wh_ref, coef_ref, h0_ref, out_ref, h_scratch,
                *, dt, method, block_t, unroll):
    """One grid step == `block_t` time steps of the LTC recurrence.

    xw_ref   : (block_t, Bb, Hp)  precomputed, scaled input projection
    wh_ref   : (Hp, Hp)           recurrent weight (transposed, scaled)
    coef_ref : (1, Hp)  f32       per-lane coefficient (1-dt/tau or 1/tau)
    h0_ref   : (Bb, Hp) f32       initial hidden state for this batch tile
    out_ref  : (block_t, Bb, Hp)  hidden states for these time steps
    h_scratch: (Bb, Hp) f32       hidden state carried across time blocks
    """
    ti = pl.program_id(1)   # time-block axis (sequential / "arbitrary")

    # Restart the recurrence at the first time block of every batch tile.
    @pl.when(ti == 0)
    def _():
        h_scratch[...] = h0_ref[...].astype(h_scratch.dtype)

    wh = wh_ref[...]                                       # resident weight
    # Hoist the (1,Hp)->(Bb,Hp) broadcast out of the unrolled step loop
    # (JAX does not CSE broadcast_in_dim).
    coef = jnp.broadcast_to(coef_ref[...], h_scratch.shape).astype(jnp.float32)

    if method == 'euler':
        def step(i, h):
            xw = xw_ref[i].astype(jnp.float32)             # (Bb, Hp)
            rec = jnp.dot(jnp.tanh(h).astype(wh.dtype), wh,
                          preferred_element_type=jnp.float32)
            h_next = coef * h + xw + rec                   # dt/tau folded in
            out_ref[i] = h_next.astype(out_ref.dtype)
            return h_next
    elif method == 'rk4':
        def ode(h, xw):
            rec = jnp.dot(jnp.tanh(h).astype(wh.dtype), wh,
                          preferred_element_type=jnp.float32)
            return xw + rec - coef * h                     # 1/tau folded in

        def step(i, h):
            xw = xw_ref[i].astype(jnp.float32)
            # incremental accumulation: at most ~2 (Bb,Hp) temporaries live
            k1 = ode(h, xw)
            acc = k1
            k2 = ode(h + (0.5 * dt) * k1, xw)
            acc = acc + 2.0 * k2
            k3 = ode(h + (0.5 * dt) * k2, xw)
            acc = acc + 2.0 * k3
            k4 = ode(h + dt * k3, xw)
            acc = acc + k4
            h_next = h + (dt / 6.0) * acc
            out_ref[i] = h_next.astype(out_ref.dtype)
            return h_next
    else:
        raise ValueError(f'unknown method: {method}')

    h_final = jax.lax.fori_loop(0, block_t, step, h_scratch[...], unroll=unroll)
    h_scratch[...] = h_final


def ltc_forward(x, wx_t, wh_t, tau, bias, *, dt=1.0, method='euler', h0=None,
                block_t=32, block_b=256, matmul_dtype=jnp.bfloat16,
                stream_dtype=jnp.float32, time_major_output=False):
    """LTCCell.forward.

    x     : [B, T, I] (or [B, I] for a single step)
    wx_t  : [I, H]  (= W_x.weight.T)
    wh_t  : [H, H]  (= W_h.weight.T)
    tau   : [H], bias : [H]
    h0    : optional [B, H] initial hidden state (zeros if None)
    Returns [B, T, H] (or [B, H]).

    matmul_dtype: MXU operand dtype for tanh(h) @ W_h (bf16 recommended on all
    current TPUs; pass jnp.float32 for bit-accuracy).  stream_dtype: dtype of
    the streamed xw / output buffers (bf16 halves the DMA traffic for very
    large B*T*H; f32 default matches the PyTorch module exactly).
    """
    if x.ndim == 2:
        out = ltc_forward(x[:, None, :], wx_t, wh_t, tau, bias, dt=dt,
                          method=method, h0=h0, block_t=block_t,
                          block_b=block_b, matmul_dtype=matmul_dtype,
                          stream_dtype=stream_dtype, time_major_output=True)
        return out[0]

    if method not in ('euler', 'rk4'):
        raise ValueError(f'unknown method: {method}')

    B, T, I = x.shape
    H = wx_t.shape[1]
    f32 = jnp.float32
    dt = float(dt)

    # Padded (lane/sublane dense) sizes.
    Hp = _round_up(max(H, 128), 128)
    Bp8 = _round_up(max(B, 8), 8)
    Bb = min(_round_up(max(int(block_b), 8), 8), Bp8)   # batch tile (sublane rows)
    Bp = _round_up(Bp8, Bb)
    TT = max(1, min(int(block_t), T))                   # time steps per grid step
    Tp = _round_up(T, TT)

    # Fold dt / tau into the constants (shortens the serial per-step chain).
    inv_tau = 1.0 / tau.astype(f32)
    if method == 'euler':
        scale = dt * inv_tau            # folded into W_x, bias, W_h
        coef = 1.0 - dt * inv_tau       # h <- coef*h + xw + tanh(h)@Wh'
    else:  # rk4
        scale = inv_tau
        coef = inv_tau                  # ode(h) = xw + tanh(h)@Wh'' - coef*h

    # --- parallel part: scaled input projection for all time steps ----------
    # Pad x / W_x / bias BEFORE the einsum so it writes the padded [T,Bp,Hp]
    # layout directly (no extra full-size padded-copy round trip through HBM).
    x_p = jnp.zeros((Bp, T, I), f32).at[:B].set(x.astype(f32))
    wx_s = jnp.zeros((I, Hp), f32).at[:, :H].set(wx_t.astype(f32) * scale[None, :])
    b_s = jnp.zeros((Hp,), f32).at[:H].set(bias.astype(f32) * scale)
    xw = jnp.einsum('bti,ih->tbh', x_p, wx_s,
                    preferred_element_type=f32) + b_s          # [T, Bp, Hp]
    if Tp != T:
        xw = jnp.pad(xw, ((0, Tp - T), (0, 0), (0, 0)))
    xw_p = xw.astype(stream_dtype)

    # Padded hidden lanes get zero weight rows/columns and zero coefficients,
    # so they never contaminate real lanes.
    wh_p = jnp.zeros((Hp, Hp), f32).at[:H, :H].set(
        wh_t.astype(f32) * scale[None, :]).astype(matmul_dtype)
    coef_p = jnp.zeros((1, Hp), f32).at[0, :H].set(coef)
    if h0 is None:
        h0_p = jnp.zeros((Bp, Hp), f32)
    else:
        h0_p = jnp.zeros((Bp, Hp), f32).at[:B, :H].set(h0.astype(f32))

    # Partial unroll for rk4 at large time blocks (caps code size).
    unroll = True if (method == 'euler' or TT <= 16) else 4

    kernel = functools.partial(_ltc_kernel, dt=dt, method=method,
                               block_t=TT, unroll=unroll)

    # Explicit VMEM budget (xw/out double-buffered + resident weight + scratch).
    sb = jnp.dtype(stream_dtype).itemsize
    wb = jnp.dtype(matmul_dtype).itemsize
    est = (2 * TT * Bb * Hp * sb          # xw blocks (double-buffered)
           + 2 * TT * Bb * Hp * sb        # out blocks
           + 2 * Hp * Hp * wb             # W_h (worst case double-buffered)
           + 2 * Bb * Hp * 4              # h0 blocks
           + Bb * Hp * 4                  # carried h scratch
           + 4 * Hp * 4)
    vmem_limit = int(min(110 * 2**20, max(32 * 2**20, int(1.25 * est))))

    def _call(single_buffer_consts):
        if single_buffer_consts:
            # Constant-index operands: no need for double buffering.
            def const_spec(shape, imap):
                return pl.BlockSpec(shape, imap, pipeline_mode=pl.Buffered(1))
        else:
            def const_spec(shape, imap):
                return pl.BlockSpec(shape, imap)

        return pl.pallas_call(
            kernel,
            out_shape=jax.ShapeDtypeStruct((Tp, Bp, Hp), stream_dtype),
            grid_spec=pltpu.PrefetchScalarGridSpec(
                num_scalar_prefetch=0,
                grid=(Bp // Bb, Tp // TT),          # (batch tiles, time blocks)
                in_specs=[
                    pl.BlockSpec((TT, Bb, Hp), lambda bi, ti: (ti, bi, 0)),  # xw
                    const_spec((Hp, Hp), lambda bi, ti: (0, 0)),             # W_h
                    const_spec((1, Hp), lambda bi, ti: (0, 0)),              # coef
                    pl.BlockSpec((Bb, Hp), lambda bi, ti: (bi, 0)),          # h0
                ],
                out_specs=pl.BlockSpec((TT, Bb, Hp), lambda bi, ti: (ti, bi, 0)),
                scratch_shapes=[pltpu.VMEM((Bb, Hp), f32)],                  # carried h
            ),
            compiler_params=pltpu.CompilerParams(
                # batch tiles are independent (uses 2nd TC on v7x);
                # the time axis carries the recurrence -> strictly sequential.
                dimension_semantics=("parallel", "arbitrary"),
                vmem_limit_bytes=vmem_limit),
        )(xw_p, wh_p, coef_p, h0_p)

    try:
        out_p = _call(True)
    except Exception:
        # Fallback for JAX/Mosaic builds without pipeline_mode / Buffered(1).
        out_p = _call(False)

    out = out_p[:T, :B, :H]                      # drop padding, [T, B, H]
    if time_major_output:
        return out
    return jnp.transpose(out, (1, 0, 2))         # [B, T, H]


def _init_params(key, input_size, hidden_size):
    """Deterministic init mirroring LTCCell._initialize_parameters shapes."""
    k1, k2, k3 = jax.random.split(key, 3)
    # xavier_uniform for W_x (torch weight shape [H, I]); stored transposed [I, H]
    limit = jnp.sqrt(6.0 / (input_size + hidden_size))
    wx_t = jax.random.uniform(k1, (input_size, hidden_size), jnp.float32,
                              minval=-limit, maxval=limit)
    # orthogonal init for W_h [H, H]; transpose of an orthogonal matrix is orthogonal
    a = jax.random.normal(k2, (hidden_size, hidden_size), jnp.float32)
    q, r = jnp.linalg.qr(a)
    q = q * jnp.sign(jnp.diag(r))[None, :]
    wh_t = q.T
    tau = jnp.abs(1.0 + 0.1 * jax.random.normal(k3, (hidden_size,), jnp.float32))
    bias = jnp.zeros((hidden_size,), jnp.float32)
    return wx_t, wh_t, tau, bias


def _reference(x_btI, wx_t, wh_t, tau, bias, dt=1.0, method='euler', h0=None):
    """Plain-JAX reference mirroring the PyTorch module."""
    B, T, I = x_btI.shape
    H = wx_t.shape[1]

    def ode(h, x):
        return (-h + x @ wx_t + jnp.tanh(h) @ wh_t + bias) / tau

    def step(h, x):
        if method == 'euler':
            h_next = h + dt * ode(h, x)
        else:
            k1 = ode(h, x)
            k2 = ode(h + dt * k1 / 2, x)
            k3 = ode(h + dt * k2 / 2, x)
            k4 = ode(h + dt * k3, x)
            h_next = h + dt * (k1 + 2 * k2 + 2 * k3 + k4) / 6
        return h_next, h_next

    h_init = (jnp.zeros((B, H), jnp.float32) if h0 is None
              else h0.astype(jnp.float32))
    _, outs = jax.lax.scan(step, h_init, jnp.transpose(x_btI, (1, 0, 2)))
    return jnp.transpose(outs, (1, 0, 2))


if __name__ == "__main__":
    key = jax.random.PRNGKey(0)
    kx, kp, kh = jax.random.split(key, 3)

    B, T, I, H = 2, 8, 4, 32
    dt = 1.0

    x = jax.random.normal(kx, (B, T, I), jnp.float32)
    wx_t, wh_t, tau, bias = _init_params(kp, I, H)

    # f32 MXU operands: tight check against the plain-JAX reference.
    for method in ('euler', 'rk4'):
        out = ltc_forward(x, wx_t, wh_t, tau, bias, dt=dt, method=method,
                          matmul_dtype=jnp.float32)
        out = jax.block_until_ready(out)
        ref = _reference(x, wx_t, wh_t, tau, bias, dt=dt, method=method)
        assert out.shape == (B, T, H)
        assert jnp.allclose(out, ref, atol=1e-4, rtol=1e-4), \
            f"mismatch vs reference ({method}, f32)"

    # Default bf16 MXU operands (perf path): looser tolerance sanity check.
    out_bf = jax.block_until_ready(
        ltc_forward(x, wx_t, wh_t, tau, bias, dt=dt, method='euler'))
    ref_e = _reference(x, wx_t, wh_t, tau, bias, dt=dt, method='euler')
    assert out_bf.shape == (B, T, H)
    assert bool(jnp.all(jnp.isfinite(out_bf)))
    assert float(jnp.max(jnp.abs(out_bf - ref_e))) < 0.25, "bf16 path too far off"

    # Custom initial hidden state + single-step (2-D input) path.
    h0 = 0.1 * jax.random.normal(kh, (B, H), jnp.float32)
    out1 = jax.block_until_ready(
        ltc_forward(x[:, 0, :], wx_t, wh_t, tau, bias, dt=dt, method='euler',
                    matmul_dtype=jnp.float32, h0=h0))
    ref1 = _reference(x[:, :1, :], wx_t, wh_t, tau, bias, dt=dt,
                      method='euler', h0=h0)[:, 0, :]
    assert out1.shape == (B, H)
    assert jnp.allclose(out1, ref1, atol=1e-4, rtol=1e-4), \
        "mismatch vs reference (single step with h0)"

    print("KERNEL_OK")
</pallas_src>

<mosaic_0001>
module attributes {stable_mosaic.version = 11 : i64} {
  func.func @_ltc_kernel(%arg0: i32, %arg1: i32, %arg2: memref<8x8x128xf32, #tpu.memory_space<vmem>>, %arg3: memref<128x128xf32, #tpu.memory_space<vmem>>, %arg4: memref<1x128xf32, #tpu.memory_space<vmem>>, %arg5: memref<8x128xf32, #tpu.memory_space<vmem>>, %arg6: memref<8x8x128xf32, #tpu.memory_space<vmem>>, %arg7: memref<8x128xf32, #tpu.memory_space<vmem>>) attributes {dimension_semantics = [#tpu.dimension_semantics<parallel>, #tpu.dimension_semantics<arbitrary>], iteration_bounds = array<i64: 1, 1>, scalar_prefetch = 0 : i64, scratch_operands = 1 : i64, tpu.core_type = #tpu.core_type<tc>, window_params = [{transform_indices = @transform_0, window_bounds = array<i64: 8, 8, 128>}, {pipeline_mode = #tpu.pipeline_mode<synchronous>, transform_indices = @transform_1, window_bounds = array<i64: 128, 128>}, {pipeline_mode = #tpu.pipeline_mode<synchronous>, transform_indices = @transform_2, window_bounds = array<i64: 1, 128>}, {transform_indices = @transform_3, window_bounds = array<i64: 8, 128>}, {transform_indices = @transform_4, window_bounds = array<i64: 8, 8, 128>}]} {
    %c0_i32 = arith.constant 0 : i32
    %0 = arith.cmpi eq, %arg1, %c0_i32 : i32
    %1 = arith.extui %0 : i1 to i32
    %c0_i32_0 = arith.constant 0 : i32
    %2 = arith.cmpi ne, %1, %c0_i32_0 : i32
    scf.if %2 {
      %c0_48 = arith.constant 0 : index
      %c0_49 = arith.constant 0 : index
      %105 = vector.load %arg5[%c0_48, %c0_49] : memref<8x128xf32, #tpu.memory_space<vmem>>, vector<8x128xf32>
      %c0_50 = arith.constant 0 : index
      %c0_51 = arith.constant 0 : index
      %106 = vector.load %arg7[%c0_50, %c0_51] : memref<8x128xf32, #tpu.memory_space<vmem>>, vector<8x128xf32>
      tpu.vector_store %arg7[%c0_50, %c0_51], %105 {strides = array<i32>} : memref<8x128xf32, #tpu.memory_space<vmem>>, vector<8x128xf32>,
    } else {
    }
    %c0 = arith.constant 0 : index
    %c0_1 = arith.constant 0 : index
    %3 = vector.load %arg3[%c0, %c0_1] : memref<128x128xf32, #tpu.memory_space<vmem>>, vector<128x128xf32>
    %c0_2 = arith.constant 0 : index
    %c0_3 = arith.constant 0 : index
    %4 = vector.load %arg4[%c0_2, %c0_3] : memref<1x128xf32, #tpu.memory_space<vmem>>, vector<1x128xf32>
    %5 = vector.shape_cast %4 : vector<1x128xf32> to vector<1x128xf32>
    %6 = vector.broadcast %5 : vector<1x128xf32> to vector<8x128xf32>
    %c0_4 = arith.constant 0 : index
    %c0_5 = arith.constant 0 : index
    %7 = vector.load %arg7[%c0_4, %c0_5] : memref<8x128xf32, #tpu.memory_space<vmem>>, vector<8x128xf32>
    %c0_i32_6 = arith.constant 0 : i32
    %8 = arith.index_cast %c0_i32_6 : i32 to index
    %c0_7 = arith.constant 0 : index
    %c0_8 = arith.constant 0 : index
    %9 = vector.load %arg2[%8, %c0_7, %c0_8] : memref<8x8x128xf32, #tpu.memory_space<vmem>>, vector<1x8x128xf32>
    %10 = vector.shape_cast %9 : vector<1x8x128xf32> to vector<8x128xf32>
    %11 = math.tanh %7 : vector<8x128xf32>
    %cst = arith.constant dense<0.000000e+00> : vector<8x128xf32>
    %12 = tpu.matmul %11, %3, %cst {dimension_numbers = #tpu.dot_dimension_numbers<[1], [0], [0], [1], [0, 0, 1, 1], [], []>} : vector<8x128xf32>, vector<128x128xf32>, vector<8x128xf32> -> vector<8x128xf32>
    %13 = arith.mulf %6, %7 : vector<8x128xf32>
    %14 = arith.addf %13, %10 : vector<8x128xf32>
    %15 = arith.addf %14, %12 : vector<8x128xf32>
    %16 = arith.index_cast %c0_i32_6 : i32 to index
    %c0_9 = arith.constant 0 : index
    %c0_10 = arith.constant 0 : index
    %17 = vector.load %arg6[%16, %c0_9, %c0_10] : memref<8x8x128xf32, #tpu.memory_space<vmem>>, vector<1x8x128xf32>
    %18 = vector.shape_cast %17 : vector<1x8x128xf32> to vector<8x128xf32>
    %19 = vector.shape_cast %15 : vector<8x128xf32> to vector<1x8x128xf32>
    tpu.vector_store %arg6[%16, %c0_9, %c0_10], %19 {strides = array<i32>} : memref<8x8x128xf32, #tpu.memory_space<vmem>>, vector<1x8x128xf32>,
    %c1_i32 = arith.constant 1 : i32
    %20 = arith.index_cast %c1_i32 : i32 to index
    %c0_11 = arith.constant 0 : index
    %c0_12 = arith.constant 0 : index
    %21 = vector.load %arg2[%20, %c0_11, %c0_12] : memref<8x8x128xf32, #tpu.memory_space<vmem>>, vector<1x8x128xf32>
    %22 = vector.shape_cast %21 : vector<1x8x128xf32> to vector<8x128xf32>
    %23 = math.tanh %15 : vector<8x128xf32>
    %cst_13 = arith.constant dense<0.000000e+00> : vector<8x128xf32>
    %24 = tpu.matmul %23, %3, %cst_13 {dimension_numbers = #tpu.dot_dimension_numbers<[1], [0], [0], [1], [0, 0, 1, 1], [], []>} : vector<8x128xf32>, vector<128x128xf32>, vector<8x128xf32> -> vector<8x128xf32>
    %25 = arith.mulf %6, %15 : vector<8x128xf32>
    %26 = arith.addf %25, %22 : vector<8x128xf32>
    %27 = arith.addf %26, %24 : vector<8x128xf32>
    %28 = arith.index_cast %c1_i32 : i32 to index
    %c0_14 = arith.constant 0 : index
    %c0_15 = arith.constant 0 : index
    %29 = vector.load %arg6[%28, %c0_14, %c0_15] : memref<8x8x128xf32, #tpu.memory_space<vmem>>, vector<1x8x128xf32>
    %30 = vector.shape_cast %29 : vector<1x8x128xf32> to vector<8x128xf32>
    %31 = vector.shape_cast %27 : vector<8x128xf32> to vector<1x8x128xf32>
    tpu.vector_store %arg6[%28, %c0_14, %c0_15], %31 {strides = array<i32>} : memref<8x8x128xf32, #tpu.memory_space<vmem>>, vector<1x8x128xf32>,
    %c2_i32 = arith.constant 2 : i32
    %32 = arith.index_cast %c2_i32 : i32 to index
    %c0_16 = arith.constant 0 : index
    %c0_17 = arith.constant 0 : index
    %33 = vector.load %arg2[%32, %c0_16, %c0_17] : memref<8x8x128xf32, #tpu.memory_space<vmem>>, vector<1x8x128xf32>
    %34 = vector.shape_cast %33 : vector<1x8x128xf32> to vector<8x128xf32>
    %35 = math.tanh %27 : vector<8x128xf32>
    %cst_18 = arith.constant dense<0.000000e+00> : vector<8x128xf32>
    %36 = tpu.matmul %35, %3, %cst_18 {dimension_numbers = #tpu.dot_dimension_numbers<[1], [0], [0], [1], [0, 0, 1, 1], [], []>} : vector<8x128xf32>, vector<128x128xf32>, vector<8x128xf32> -> vector<8x128xf32>
    %37 = arith.mulf %6, %27 : vector<8x128xf32>
    %38 = arith.addf %37, %34 : vector<8x128xf32>
    %39 = arith.addf %38, %36 : vector<8x128xf32>
    %40 = arith.index_cast %c2_i32 : i32 to index
    %c0_19 = arith.constant 0 : index
    %c0_20 = arith.constant 0 : index
    %41 = vector.load %arg6[%40, %c0_19, %c0_20] : memref<8x8x128xf32, #tpu.memory_space<vmem>>, vector<1x8x128xf32>
    %42 = vector.shape_cast %41 : vector<1x8x128xf32> to vector<8x128xf32>
    %43 = vector.shape_cast %39 : vector<8x128xf32> to vector<1x8x128xf32>
    tpu.vector_store %arg6[%40, %c0_19, %c0_20], %43 {strides = array<i32>} : memref<8x8x128xf32, #tpu.memory_space<vmem>>, vector<1x8x128xf32>,
    %c3_i32 = arith.constant 3 : i32
    %44 = arith.index_cast %c3_i32 : i32 to index
    %c0_21 = arith.constant 0 : index
    %c0_22 = arith.constant 0 : index
    %45 = vector.load %arg2[%44, %c0_21, %c0_22] : memref<8x8x128xf32, #tpu.memory_space<vmem>>, vector<1x8x128xf32>
    %46 = vector.shape_cast %45 : vector<1x8x128xf32> to vector<8x128xf32>
    %47 = math.tanh %39 : vector<8x128xf32>
    %cst_23 = arith.constant dense<0.000000e+00> : vector<8x128xf32>
    %48 = tpu.matmul %47, %3, %cst_23 {dimension_numbers = #tpu.dot_dimension_numbers<[1], [0], [0], [1], [0, 0, 1, 1], [], []>} : vector<8x128xf32>, vector<128x128xf32>, vector<8x128xf32> -> vector<8x128xf32>
    %49 = arith.mulf %6, %39 : vector<8x128xf32>
    %50 = arith.addf %49, %46 : vector<8x128xf32>
    %51 = arith.addf %50, %48 : vector<8x128xf32>
    %52 = arith.index_cast %c3_i32 : i32 to index
    %c0_24 = arith.constant 0 : index
    %c0_25 = arith.constant 0 : index
    %53 = vector.load %arg6[%52, %c0_24, %c0_25] : memref<8x8x128xf32, #tpu.memory_space<vmem>>, vector<1x8x128xf32>
    %54 = vector.shape_cast %53 : vector<1x8x128xf32> to vector<8x128xf32>
    %55 = vector.shape_cast %51 : vector<8x128xf32> to vector<1x8x128xf32>
    tpu.vector_store %arg6[%52, %c0_24, %c0_25], %55 {strides = array<i32>} : memref<8x8x128xf32, #tpu.memory_space<vmem>>, vector<1x8x128xf32>,
    %c4_i32 = arith.constant 4 : i32
    %56 = arith.index_cast %c4_i32 : i32 to index
    %c0_26 = arith.constant 0 : index
    %c0_27 = arith.constant 0 : index
    %57 = vector.load %arg2[%56, %c0_26, %c0_27] : memref<8x8x128xf32, #tpu.memory_space<vmem>>, vector<1x8x128xf32>
    %58 = vector.shape_cast %57 : vector<1x8x128xf32> to vector<8x128xf32>
    %59 = math.tanh %51 : vector<8x128xf32>
    %cst_28 = arith.constant dense<0.000000e+00> : vector<8x128xf32>
    %60 = tpu.matmul %59, %3, %cst_28 {dimension_numbers = #tpu.dot_dimension_numbers<[1], [0], [0], [1], [0, 0, 1, 1], [], []>} : vector<8x128xf32>, vector<128x128xf32>, vector<8x128xf32> -> vector<8x128xf32>
    %61 = arith.mulf %6, %51 : vector<8x128xf32>
    %62 = arith.addf %61, %58 : vector<8x128xf32>
    %63 = arith.addf %62, %60 : vector<8x128xf32>
    %64 = arith.index_cast %c4_i32 : i32 to index
    %c0_29 = arith.constant 0 : index
    %c0_30 = arith.constant 0 : index
    %65 = vector.load %arg6[%64, %c0_29, %c0_30] : memref<8x8x128xf32, #tpu.memory_space<vmem>>, vector<1x8x128xf32>
    %66 = vector.shape_cast %65 : vector<1x8x128xf32> to vector<8x128xf32>
    %67 = vector.shape_cast %63 : vector<8x128xf32> to vector<1x8x128xf32>
    tpu.vector_store %arg6[%64, %c0_29, %c0_30], %67 {strides = array<i32>} : memref<8x8x128xf32, #tpu.memory_space<vmem>>, vector<1x8x128xf32>,
    %c5_i32 = arith.constant 5 : i32
    %68 = arith.index_cast %c5_i32 : i32 to index
    %c0_31 = arith.constant 0 : index
    %c0_32 = arith.constant 0 : index
    %69 = vector.load %arg2[%68, %c0_31, %c0_32] : memref<8x8x128xf32, #tpu.memory_space<vmem>>, vector<1x8x128xf32>
    %70 = vector.shape_cast %69 : vector<1x8x128xf32> to vector<8x128xf32>
    %71 = math.tanh %63 : vector<8x128xf32>
    %cst_33 = arith.constant dense<0.000000e+00> : vector<8x128xf32>
    %72 = tpu.matmul %71, %3, %cst_33 {dimension_numbers = #tpu.dot_dimension_numbers<[1], [0], [0], [1], [0, 0, 1, 1], [], []>} : vector<8x128xf32>, vector<128x128xf32>, vector<8x128xf32> -> vector<8x128xf32>
    %73 = arith.mulf %6, %63 : vector<8x128xf32>
    %74 = arith.addf %73, %70 : vector<8x128xf32>
    %75 = arith.addf %74, %72 : vector<8x128xf32>
    %76 = arith.index_cast %c5_i32 : i32 to index
    %c0_34 = arith.constant 0 : index
    %c0_35 = arith.constant 0 : index
    %77 = vector.load %arg6[%76, %c0_34, %c0_35] : memref<8x8x128xf32, #tpu.memory_space<vmem>>, vector<1x8x128xf32>
    %78 = vector.shape_cast %77 : vector<1x8x128xf32> to vector<8x128xf32>
    %79 = vector.shape_cast %75 : vector<8x128xf32> to vector<1x8x128xf32>
    tpu.vector_store %arg6[%76, %c0_34, %c0_35], %79 {strides = array<i32>} : memref<8x8x128xf32, #tpu.memory_space<vmem>>, vector<1x8x128xf32>,
    %c6_i32 = arith.constant 6 : i32
    %80 = arith.index_cast %c6_i32 : i32 to index
    %c0_36 = arith.constant 0 : index
    %c0_37 = arith.constant 0 : index
    %81 = vector.load %arg2[%80, %c0_36, %c0_37] : memref<8x8x128xf32, #tpu.memory_space<vmem>>, vector<1x8x128xf32>
    %82 = vector.shape_cast %81 : vector<1x8x128xf32> to vector<8x128xf32>
    %83 = math.tanh %75 : vector<8x128xf32>
    %cst_38 = arith.constant dense<0.000000e+00> : vector<8x128xf32>
    %84 = tpu.matmul %83, %3, %cst_38 {dimension_numbers = #tpu.dot_dimension_numbers<[1], [0], [0], [1], [0, 0, 1, 1], [], []>} : vector<8x128xf32>, vector<128x128xf32>, vector<8x128xf32> -> vector<8x128xf32>
    %85 = arith.mulf %6, %75 : vector<8x128xf32>
    %86 = arith.addf %85, %82 : vector<8x128xf32>
    %87 = arith.addf %86, %84 : vector<8x128xf32>
    %88 = arith.index_cast %c6_i32 : i32 to index
    %c0_39 = arith.constant 0 : index
    %c0_40 = arith.constant 0 : index
    %89 = vector.load %arg6[%88, %c0_39, %c0_40] : memref<8x8x128xf32, #tpu.memory_space<vmem>>, vector<1x8x128xf32>
    %90 = vector.shape_cast %89 : vector<1x8x128xf32> to vector<8x128xf32>
    %91 = vector.shape_cast %87 : vector<8x128xf32> to vector<1x8x128xf32>
    tpu.vector_store %arg6[%88, %c0_39, %c0_40], %91 {strides = array<i32>} : memref<8x8x128xf32, #tpu.memory_space<vmem>>, vector<1x8x128xf32>,
    %c7_i32 = arith.constant 7 : i32
    %92 = arith.index_cast %c7_i32 : i32 to index
    %c0_41 = arith.constant 0 : index
    %c0_42 = arith.constant 0 : index
    %93 = vector.load %arg2[%92, %c0_41, %c0_42] : memref<8x8x128xf32, #tpu.memory_space<vmem>>, vector<1x8x128xf32>
    %94 = vector.shape_cast %93 : vector<1x8x128xf32> to vector<8x128xf32>
    %95 = math.tanh %87 : vector<8x128xf32>
    %cst_43 = arith.constant dense<0.000000e+00> : vector<8x128xf32>
    %96 = tpu.matmul %95, %3, %cst_43 {dimension_numbers = #tpu.dot_dimension_numbers<[1], [0], [0], [1], [0, 0, 1, 1], [], []>} : vector<8x128xf32>, vector<128x128xf32>, vector<8x128xf32> -> vector<8x128xf32>
    %97 = arith.mulf %6, %87 : vector<8x128xf32>
    %98 = arith.addf %97, %94 : vector<8x128xf32>
    %99 = arith.addf %98, %96 : vector<8x128xf32>
    %100 = arith.index_cast %c7_i32 : i32 to index
    %c0_44 = arith.constant 0 : index
    %c0_45 = arith.constant 0 : index
    %101 = vector.load %arg6[%100, %c0_44, %c0_45] : memref<8x8x128xf32, #tpu.memory_space<vmem>>, vector<1x8x128xf32>
    %102 = vector.shape_cast %101 : vector<1x8x128xf32> to vector<8x128xf32>
    %103 = vector.shape_cast %99 : vector<8x128xf32> to vector<1x8x128xf32>
    tpu.vector_store %arg6[%100, %c0_44, %c0_45], %103 {strides = array<i32>} : memref<8x8x128xf32, #tpu.memory_space<vmem>>, vector<1x8x128xf32>,
    %c8_i32 = arith.constant 8 : i32
    %c0_46 = arith.constant 0 : index
    %c0_47 = arith.constant 0 : index
    %104 = vector.load %arg7[%c0_46, %c0_47] : memref<8x128xf32, #tpu.memory_space<vmem>>, vector<8x128xf32>
    tpu.vector_store %arg7[%c0_46, %c0_47], %99 {strides = array<i32>} : memref<8x128xf32, #tpu.memory_space<vmem>>, vector<8x128xf32>,
    return
  }
  func.func @transform_0(%arg0: i32, %arg1: i32) -> (i32, i32, i32) {
    %c0_i32 = arith.constant 0 : i32
    %c0_i32_0 = arith.constant 0 : i32
    return %arg1, %arg0, %c0_i32 : i32, i32, i32
  }
  func.func @transform_1(%arg0: i32, %arg1: i32) -> (i32, i32) {
    %c0_i32 = arith.constant 0 : i32
    %c0_i32_0 = arith.constant 0 : i32
    %c0_i32_1 = arith.constant 0 : i32
    return %c0_i32, %c0_i32_0 : i32, i32
  }
  func.func @transform_2(%arg0: i32, %arg1: i32) -> (i32, i32) {
    %c0_i32 = arith.constant 0 : i32
    %c0_i32_0 = arith.constant 0 : i32
    %c0_i32_1 = arith.constant 0 : i32
    return %c0_i32, %c0_i32_0 : i32, i32
  }
  func.func @transform_3(%arg0: i32, %arg1: i32) -> (i32, i32) {
    %c0_i32 = arith.constant 0 : i32
    %c0_i32_0 = arith.constant 0 : i32
    return %arg0, %c0_i32 : i32, i32
  }
  func.func @transform_4(%arg0: i32, %arg1: i32) -> (i32, i32, i32) {
    %c0_i32 = arith.constant 0 : i32
    %c0_i32_0 = arith.constant 0 : i32
    return %arg1, %arg0, %c0_i32 : i32, i32, i32
  }
}

module attributes {stable_mosaic.version = 11 : i64} {
  func.func @_ltc_kernel(%arg0: i32, %arg1: i32, %arg2: memref<8x8x128xf32, #tpu.memory_space<vmem>>, %arg3: memref<128x128xf32, #tpu.memory_space<vmem>>, %arg4: memref<1x128xf32, #tpu.memory_space<vmem>>, %arg5: memref<8x128xf32, #tpu.memory_space<vmem>>, %arg6: memref<8x8x128xf32, #tpu.memory_space<vmem>>, %arg7: memref<8x128xf32, #tpu.memory_space<vmem>>) attributes {dimension_semantics = [#tpu.dimension_semantics<parallel>, #tpu.dimension_semantics<arbitrary>], iteration_bounds = array<i64: 1, 1>, scalar_prefetch = 0 : i64, scratch_operands = 1 : i64, tpu.core_type = #tpu.core_type<tc>, window_params = [{transform_indices = @transform_0, window_bounds = array<i64: 8, 8, 128>}, {pipeline_mode = #tpu.pipeline_mode<synchronous>, transform_indices = @transform_1, window_bounds = array<i64: 128, 128>}, {pipeline_mode = #tpu.pipeline_mode<synchronous>, transform_indices = @transform_2, window_bounds = array<i64: 1, 128>}, {transform_indices = @transform_3, window_bounds = array<i64: 8, 128>}, {transform_indices = @transform_4, window_bounds = array<i64: 8, 8, 128>}]} {
    %c0_i32 = arith.constant 0 : i32
    %0 = arith.cmpi eq, %arg1, %c0_i32 : i32
    %1 = arith.extui %0 : i1 to i32
    %c0_i32_0 = arith.constant 0 : i32
    %2 = arith.cmpi ne, %1, %c0_i32_0 : i32
    scf.if %2 {
      %c0_48 = arith.constant 0 : index
      %c0_49 = arith.constant 0 : index
      %105 = vector.load %arg5[%c0_48, %c0_49] : memref<8x128xf32, #tpu.memory_space<vmem>>, vector<8x128xf32>
      %c0_50 = arith.constant 0 : index
      %c0_51 = arith.constant 0 : index
      %106 = vector.load %arg7[%c0_50, %c0_51] : memref<8x128xf32, #tpu.memory_space<vmem>>, vector<8x128xf32>
      tpu.vector_store %arg7[%c0_50, %c0_51], %105 {strides = array<i32>} : memref<8x128xf32, #tpu.memory_space<vmem>>, vector<8x128xf32>,
    } else {
    }
    %c0 = arith.constant 0 : index
    %c0_1 = arith.constant 0 : index
    %3 = vector.load %arg3[%c0, %c0_1] : memref<128x128xf32, #tpu.memory_space<vmem>>, vector<128x128xf32>
    %c0_2 = arith.constant 0 : index
    %c0_3 = arith.constant 0 : index
    %4 = vector.load %arg4[%c0_2, %c0_3] : memref<1x128xf32, #tpu.memory_space<vmem>>, vector<1x128xf32>
    %5 = vector.shape_cast %4 : vector<1x128xf32> to vector<1x128xf32>
    %6 = vector.broadcast %5 : vector<1x128xf32> to vector<8x128xf32>
    %c0_4 = arith.constant 0 : index
    %c0_5 = arith.constant 0 : index
    %7 = vector.load %arg7[%c0_4, %c0_5] : memref<8x128xf32, #tpu.memory_space<vmem>>, vector<8x128xf32>
    %c0_i32_6 = arith.constant 0 : i32
    %8 = arith.index_cast %c0_i32_6 : i32 to index
    %c0_7 = arith.constant 0 : index
    %c0_8 = arith.constant 0 : index
    %9 = vector.load %arg2[%8, %c0_7, %c0_8] : memref<8x8x128xf32, #tpu.memory_space<vmem>>, vector<1x8x128xf32>
    %10 = vector.shape_cast %9 : vector<1x8x128xf32> to vector<8x128xf32>
    %11 = math.tanh %7 : vector<8x128xf32>
    %cst = arith.constant dense<0.000000e+00> : vector<8x128xf32>
    %12 = tpu.matmul %11, %3, %cst {dimension_numbers = #tpu.dot_dimension_numbers<[1], [0], [0], [1], [0, 0, 1, 1], [], []>} : vector<8x128xf32>, vector<128x128xf32>, vector<8x128xf32> -> vector<8x128xf32>
    %13 = arith.mulf %6, %7 : vector<8x128xf32>
    %14 = arith.addf %13, %10 : vector<8x128xf32>
    %15 = arith.addf %14, %12 : vector<8x128xf32>
    %16 = arith.index_cast %c0_i32_6 : i32 to index
    %c0_9 = arith.constant 0 : index
    %c0_10 = arith.constant 0 : index
    %17 = vector.load %arg6[%16, %c0_9, %c0_10] : memref<8x8x128xf32, #tpu.memory_space<vmem>>, vector<1x8x128xf32>
    %18 = vector.shape_cast %17 : vector<1x8x128xf32> to vector<8x128xf32>
    %19 = vector.shape_cast %15 : vector<8x128xf32> to vector<1x8x128xf32>
    tpu.vector_store %arg6[%16, %c0_9, %c0_10], %19 {strides = array<i32>} : memref<8x8x128xf32, #tpu.memory_space<vmem>>, vector<1x8x128xf32>,
    %c1_i32 = arith.constant 1 : i32
    %20 = arith.index_cast %c1_i32 : i32 to index
    %c0_11 = arith.constant 0 : index
    %c0_12 = arith.constant 0 : index
    %21 = vector.load %arg2[%20, %c0_11, %c0_12] : memref<8x8x128xf32, #tpu.memory_space<vmem>>, vector<1x8x128xf32>
    %22 = vector.shape_cast %21 : vector<1x8x128xf32> to vector<8x128xf32>
    %23 = math.tanh %15 : vector<8x128xf32>
    %cst_13 = arith.constant dense<0.000000e+00> : vector<8x128xf32>
    %24 = tpu.matmul %23, %3, %cst_13 {dimension_numbers = #tpu.dot_dimension_numbers<[1], [0], [0], [1], [0, 0, 1, 1], [], []>} : vector<8x128xf32>, vector<128x128xf32>, vector<8x128xf32> -> vector<8x128xf32>
    %25 = arith.mulf %6, %15 : vector<8x128xf32>
    %26 = arith.addf %25, %22 : vector<8x128xf32>
    %27 = arith.addf %26, %24 : vector<8x128xf32>
    %28 = arith.index_cast %c1_i32 : i32 to index
    %c0_14 = arith.constant 0 : index
    %c0_15 = arith.constant 0 : index
    %29 = vector.load %arg6[%28, %c0_14, %c0_15] : memref<8x8x128xf32, #tpu.memory_space<vmem>>, vector<1x8x128xf32>
    %30 = vector.shape_cast %29 : vector<1x8x128xf32> to vector<8x128xf32>
    %31 = vector.shape_cast %27 : vector<8x128xf32> to vector<1x8x128xf32>
    tpu.vector_store %arg6[%28, %c0_14, %c0_15], %31 {strides = array<i32>} : memref<8x8x128xf32, #tpu.memory_space<vmem>>, vector<1x8x128xf32>,
    %c2_i32 = arith.constant 2 : i32
    %32 = arith.index_cast %c2_i32 : i32 to index
    %c0_16 = arith.constant 0 : index
    %c0_17 = arith.constant 0 : index
    %33 = vector.load %arg2[%32, %c0_16, %c0_17] : memref<8x8x128xf32, #tpu.memory_space<vmem>>, vector<1x8x128xf32>
    %34 = vector.shape_cast %33 : vector<1x8x128xf32> to vector<8x128xf32>
    %35 = math.tanh %27 : vector<8x128xf32>
    %cst_18 = arith.constant dense<0.000000e+00> : vector<8x128xf32>
    %36 = tpu.matmul %35, %3, %cst_18 {dimension_numbers = #tpu.dot_dimension_numbers<[1], [0], [0], [1], [0, 0, 1, 1], [], []>} : vector<8x128xf32>, vector<128x128xf32>, vector<8x128xf32> -> vector<8x128xf32>
    %37 = arith.mulf %6, %27 : vector<8x128xf32>
    %38 = arith.addf %37, %34 : vector<8x128xf32>
    %39 = arith.addf %38, %36 : vector<8x128xf32>
    %40 = arith.index_cast %c2_i32 : i32 to index
    %c0_19 = arith.constant 0 : index
    %c0_20 = arith.constant 0 : index
    %41 = vector.load %arg6[%40, %c0_19, %c0_20] : memref<8x8x128xf32, #tpu.memory_space<vmem>>, vector<1x8x128xf32>
    %42 = vector.shape_cast %41 : vector<1x8x128xf32> to vector<8x128xf32>
    %43 = vector.shape_cast %39 : vector<8x128xf32> to vector<1x8x128xf32>
    tpu.vector_store %arg6[%40, %c0_19, %c0_20], %43 {strides = array<i32>} : memref<8x8x128xf32, #tpu.memory_space<vmem>>, vector<1x8x128xf32>,
    %c3_i32 = arith.constant 3 : i32
    %44 = arith.index_cast %c3_i32 : i32 to index
    %c0_21 = arith.constant 0 : index
    %c0_22 = arith.constant 0 : index
    %45 = vector.load %arg2[%44, %c0_21, %c0_22] : memref<8x8x128xf32, #tpu.memory_space<vmem>>, vector<1x8x128xf32>
    %46 = vector.shape_cast %45 : vector<1x8x128xf32> to vector<8x128xf32>
    %47 = math.tanh %39 : vector<8x128xf32>
    %cst_23 = arith.constant dense<0.000000e+00> : vector<8x128xf32>
    %48 = tpu.matmul %47, %3, %cst_23 {dimension_numbers = #tpu.dot_dimension_numbers<[1], [0], [0], [1], [0, 0, 1, 1], [], []>} : vector<8x128xf32>, vector<128x128xf32>, vector<8x128xf32> -> vector<8x128xf32>
    %49 = arith.mulf %6, %39 : vector<8x128xf32>
    %50 = arith.addf %49, %46 : vector<8x128xf32>
    %51 = arith.addf %50, %48 : vector<8x128xf32>
    %52 = arith.index_cast %c3_i32 : i32 to index
    %c0_24 = arith.constant 0 : index
    %c0_25 = arith.constant 0 : index
    %53 = vector.load %arg6[%52, %c0_24, %c0_25] : memref<8x8x128xf32, #tpu.memory_space<vmem>>, vector<1x8x128xf32>
    %54 = vector.shape_cast %53 : vector<1x8x128xf32> to vector<8x128xf32>
    %55 = vector.shape_cast %51 : vector<8x128xf32> to vector<1x8x128xf32>
    tpu.vector_store %arg6[%52, %c0_24, %c0_25], %55 {strides = array<i32>} : memref<8x8x128xf32, #tpu.memory_space<vmem>>, vector<1x8x128xf32>,
    %c4_i32 = arith.constant 4 : i32
    %56 = arith.index_cast %c4_i32 : i32 to index
    %c0_26 = arith.constant 0 : index
    %c0_27 = arith.constant 0 : index
    %57 = vector.load %arg2[%56, %c0_26, %c0_27] : memref<8x8x128xf32, #tpu.memory_space<vmem>>, vector<1x8x128xf32>
    %58 = vector.shape_cast %57 : vector<1x8x128xf32> to vector<8x128xf32>
    %59 = math.tanh %51 : vector<8x128xf32>
    %cst_28 = arith.constant dense<0.000000e+00> : vector<8x128xf32>
    %60 = tpu.matmul %59, %3, %cst_28 {dimension_numbers = #tpu.dot_dimension_numbers<[1], [0], [0], [1], [0, 0, 1, 1], [], []>} : vector<8x128xf32>, vector<128x128xf32>, vector<8x128xf32> -> vector<8x128xf32>
    %61 = arith.mulf %6, %51 : vector<8x128xf32>
    %62 = arith.addf %61, %58 : vector<8x128xf32>
    %63 = arith.addf %62, %60 : vector<8x128xf32>
    %64 = arith.index_cast %c4_i32 : i32 to index
    %c0_29 = arith.constant 0 : index
    %c0_30 = arith.constant 0 : index
    %65 = vector.load %arg6[%64, %c0_29, %c0_30] : memref<8x8x128xf32, #tpu.memory_space<vmem>>, vector<1x8x128xf32>
    %66 = vector.shape_cast %65 : vector<1x8x128xf32> to vector<8x128xf32>
    %67 = vector.shape_cast %63 : vector<8x128xf32> to vector<1x8x128xf32>
    tpu.vector_store %arg6[%64, %c0_29, %c0_30], %67 {strides = array<i32>} : memref<8x8x128xf32, #tpu.memory_space<vmem>>, vector<1x8x128xf32>,
    %c5_i32 = arith.constant 5 : i32
    %68 = arith.index_cast %c5_i32 : i32 to index
    %c0_31 = arith.constant 0 : index
    %c0_32 = arith.constant 0 : index
    %69 = vector.load %arg2[%68, %c0_31, %c0_32] : memref<8x8x128xf32, #tpu.memory_space<vmem>>, vector<1x8x128xf32>
    %70 = vector.shape_cast %69 : vector<1x8x128xf32> to vector<8x128xf32>
    %71 = math.tanh %63 : vector<8x128xf32>
    %cst_33 = arith.constant dense<0.000000e+00> : vector<8x128xf32>
    %72 = tpu.matmul %71, %3, %cst_33 {dimension_numbers = #tpu.dot_dimension_numbers<[1], [0], [0], [1], [0, 0, 1, 1], [], []>} : vector<8x128xf32>, vector<128x128xf32>, vector<8x128xf32> -> vector<8x128xf32>
    %73 = arith.mulf %6, %63 : vector<8x128xf32>
    %74 = arith.addf %73, %70 : vector<8x128xf32>
    %75 = arith.addf %74, %72 : vector<8x128xf32>
    %76 = arith.index_cast %c5_i32 : i32 to index
    %c0_34 = arith.constant 0 : index
    %c0_35 = arith.constant 0 : index
    %77 = vector.load %arg6[%76, %c0_34, %c0_35] : memref<8x8x128xf32, #tpu.memory_space<vmem>>, vector<1x8x128xf32>
    %78 = vector.shape_cast %77 : vector<1x8x128xf32> to vector<8x128xf32>
    %79 = vector.shape_cast %75 : vector<8x128xf32> to vector<1x8x128xf32>
    tpu.vector_store %arg6[%76, %c0_34, %c0_35], %79 {strides = array<i32>} : memref<8x8x128xf32, #tpu.memory_space<vmem>>, vector<1x8x128xf32>,
    %c6_i32 = arith.constant 6 : i32
    %80 = arith.index_cast %c6_i32 : i32 to index
    %c0_36 = arith.constant 0 : index
    %c0_37 = arith.constant 0 : index
    %81 = vector.load %arg2[%80, %c0_36, %c0_37] : memref<8x8x128xf32, #tpu.memory_space<vmem>>, vector<1x8x128xf32>
    %82 = vector.shape_cast %81 : vector<1x8x128xf32> to vector<8x128xf32>
    %83 = math.tanh %75 : vector<8x128xf32>
    %cst_38 = arith.constant dense<0.000000e+00> : vector<8x128xf32>
    %84 = tpu.matmul %83, %3, %cst_38 {dimension_numbers = #tpu.dot_dimension_numbers<[1], [0], [0], [1], [0, 0, 1, 1], [], []>} : vector<8x128xf32>, vector<128x128xf32>, vector<8x128xf32> -> vector<8x128xf32>
    %85 = arith.mulf %6, %75 : vector<8x128xf32>
    %86 = arith.addf %85, %82 : vector<8x128xf32>
    %87 = arith.addf %86, %84 : vector<8x128xf32>
    %88 = arith.index_cast %c6_i32 : i32 to index
    %c0_39 = arith.constant 0 : index
    %c0_40 = arith.constant 0 : index
    %89 = vector.load %arg6[%88, %c0_39, %c0_40] : memref<8x8x128xf32, #tpu.memory_space<vmem>>, vector<1x8x128xf32>
    %90 = vector.shape_cast %89 : vector<1x8x128xf32> to vector<8x128xf32>
    %91 = vector.shape_cast %87 : vector<8x128xf32> to vector<1x8x128xf32>
    tpu.vector_store %arg6[%88, %c0_39, %c0_40], %91 {strides = array<i32>} : memref<8x8x128xf32, #tpu.memory_space<vmem>>, vector<1x8x128xf32>,
    %c7_i32 = arith.constant 7 : i32
    %92 = arith.index_cast %c7_i32 : i32 to index
    %c0_41 = arith.constant 0 : index
    %c0_42 = arith.constant 0 : index
    %93 = vector.load %arg2[%92, %c0_41, %c0_42] : memref<8x8x128xf32, #tpu.memory_space<vmem>>, vector<1x8x128xf32>
    %94 = vector.shape_cast %93 : vector<1x8x128xf32> to vector<8x128xf32>
    %95 = math.tanh %87 : vector<8x128xf32>
    %cst_43 = arith.constant dense<0.000000e+00> : vector<8x128xf32>
    %96 = tpu.matmul %95, %3, %cst_43 {dimension_numbers = #tpu.dot_dimension_numbers<[1], [0], [0], [1], [0, 0, 1, 1], [], []>} : vector<8x128xf32>, vector<128x128xf32>, vector<8x128xf32> -> vector<8x128xf32>
    %97 = arith.mulf %6, %87 : vector<8x128xf32>
    %98 = arith.addf %97, %94 : vector<8x128xf32>
    %99 = arith.addf %98, %96 : vector<8x128xf32>
    %100 = arith.index_cast %c7_i32 : i32 to index
    %c0_44 = arith.constant 0 : index
    %c0_45 = arith.constant 0 : index
    %101 = vector.load %arg6[%100, %c0_44, %c0_45] : memref<8x8x128xf32, #tpu.memory_space<vmem>>, vector<1x8x128xf32>
    %102 = vector.shape_cast %101 : vector<1x8x128xf32> to vector<8x128xf32>
    %103 = vector.shape_cast %99 : vector<8x128xf32> to vector<1x8x128xf32>
    tpu.vector_store %arg6[%100, %c0_44, %c0_45], %103 {strides = array<i32>} : memref<8x8x128xf32, #tpu.memory_space<vmem>>, vector<1x8x128xf32>,
    %c8_i32 = arith.constant 8 : i32
    %c0_46 = arith.constant 0 : index
    %c0_47 = arith.constant 0 : index
    %104 = vector.load %arg7[%c0_46, %c0_47] : memref<8x128xf32, #tpu.memory_space<vmem>>, vector<8x128xf32>
    tpu.vector_store %arg7[%c0_46, %c0_47], %99 {strides = array<i32>} : memref<8x128xf32, #tpu.memory_space<vmem>>, vector<8x128xf32>,
    return
  }
  func.func @transform_0(%arg0: i32, %arg1: i32) -> (i32, i32, i32) {
    %c0_i32 = arith.constant 0 : i32
    %c0_i32_0 = arith.constant 0 : i32
    return %arg1, %arg0, %c0_i32 : i32, i32, i32
  }
  func.func @transform_1(%arg0: i32, %arg1: i32) -> (i32, i32) {
    %c0_i32 = arith.constant 0 : i32
    %c0_i32_0 = arith.constant 0 : i32
    %c0_i32_1 = arith.constant 0 : i32
    return %c0_i32, %c0_i32_0 : i32, i32
  }
  func.func @transform_2(%arg0: i32, %arg1: i32) -> (i32, i32) {
    %c0_i32 = arith.constant 0 : i32
    %c0_i32_0 = arith.constant 0 : i32
    %c0_i32_1 = arith.constant 0 : i32
    return %c0_i32, %c0_i32_0 : i32, i32
  }
  func.func @transform_3(%arg0: i32, %arg1: i32) -> (i32, i32) {
    %c0_i32 = arith.constant 0 : i32
    %c0_i32_0 = arith.constant 0 : i32
    return %arg0, %c0_i32 : i32, i32
  }
  func.func @transform_4(%arg0: i32, %arg1: i32) -> (i32, i32, i32) {
    %c0_i32 = arith.constant 0 : i32
    %c0_i32_0 = arith.constant 0 : i32
    return %arg1, %arg0, %c0_i32 : i32, i32, i32
  }
}

</mosaic_0001>

<llo_original>
// kernel: tpu_custom_call.1
$region0: #{tpu_custom_call.1}
  #allocation0 [shape = 'u32[]', space=smem, size = 0x4, offset = 0x4, fixed_abs, tag = 'smem constant byte address 0x4 - core index']
  #allocation1 [shape = 'u32[144,128]{1,0:T(1,128)}', space=vmem, size = 0x12000, scoped, tag = 'internal scratch']
  #allocation2 [shape = 'f32[8,128]{1,0:T(8,128)}', space=vmem, size = 0x1000, scoped, tag = 'scratch operand']
  %s0 = inlined_call_operand.hbm [shape: f32[8,8,128], index: 0, kind: input, shape index: {}]
  %s1 = inlined_call_operand.hbm [shape: f32[128,128], index: 1, kind: input, shape index: {}]
  %s2 = inlined_call_operand.vmem [shape: f32[1,128], index: 2, kind: input, shape index: {}]
  %s3 = inlined_call_operand.vmem [shape: f32[8,128], index: 3, kind: input, shape index: {}]
  %s4 = inlined_call_operand.hbm [shape: f32[8,8,128], index: 4, kind: output, shape index: {}]
  %s5 = sld [smem:[#allocation0]]
  $region38: #{tpu_custom_call.1} parent=0
    _
  %s7 = ssub.s32 1, %s5
  %s8 = scalar_select 0, %s7, %s5
  $region1: #{tpu_custom_call.1} parent=0
    #allocation3 [shape = 'u8[32768]{0}', space=vmem, size = 0x8000, scoped, tag = 'input window, operand 0, single buffered']
    #allocation4 [shape = 's32[1]{0}', space=sflag, size = 0x4, scoped, tag = 'scoped memory for tpu_custom_call.1']
    #allocation5 [shape = 's32[1]{0}', space=sflag, size = 0x4, scoped, tag = 'scoped memory for tpu_custom_call.1']
    #allocation6 [shape = 'u8[65536]{0}', space=vmem, size = 0x10000, scoped, tag = 'input window, operand 1, single buffered']
    #allocation7 [shape = 's32[1]{0}', space=sflag, size = 0x4, scoped, tag = 'scoped memory for tpu_custom_call.1']
    #allocation8 [shape = 'u8[32768]{0}', space=vmem, size = 0x8000, scoped, tag = 'output window, operand 0, single buffered']
    %9 = vsyncpa [#allocation4], 0
    %10 = vsyncpa [#allocation7], 0
    %11 = vsyncpa [#allocation5], 0
    // Predicated region
    $region2: #{tpu_custom_call.1} parent=1 // pred_check
      _
    $region3: #{tpu_custom_call.1} parent=1 // pred_check_branch
      %13 = sbr.rel (0) target = $region5
    $region4: #{tpu_custom_call.1} parent=1 // pred_region
      %s15 = ssub.s32 1024, 1024
      %16 = vsyncadd [#allocation4], %s15
      %s17 = sshll.u32 [#allocation3], 4
      %s18 = int_to_ptr.vmem [resolvable:$true] %s17
      %23 = dma.hbm_to_vmem [thread:$0]  %s0, 1024, %s18, [#allocation4], 128, 128, 8
    $region5: #{tpu_custom_call.1} parent=1 // pred_fallthru
      _
    // Predicated region
    $region6: #{tpu_custom_call.1} parent=1 // pred_check
      _
    $region7: #{tpu_custom_call.1} parent=1 // pred_check_branch
      %25 = sbr.rel (0) target = $region9
    $region8: #{tpu_custom_call.1} parent=1 // pred_region
      %s27 = ssub.s32 2048, 2048
      %28 = vsyncadd [#allocation7], %s27
      %s29 = sshll.u32 [#allocation6], 4
      %s30 = int_to_ptr.vmem [resolvable:$true] %s29
      %35 = dma.hbm_to_vmem [thread:$0]  %s1, 2048, %s30, [#allocation7], 128, 128, 8
    $region9: #{tpu_custom_call.1} parent=1 // pred_fallthru
      _
    // Predicated region
    $region10: #{tpu_custom_call.1} parent=1 // pred_check
      _
    $region11: #{tpu_custom_call.1} parent=1 // pred_check_branch
      %37 = sbr.rel (0) target = $region13
    $region12: #{tpu_custom_call.1} parent=1 // pred_region
      _
    $region13: #{tpu_custom_call.1} parent=1 // pred_fallthru
      _
    // Predicated region
    $region14: #{tpu_custom_call.1} parent=1 // pred_check
      _
    $region15: #{tpu_custom_call.1} parent=1 // pred_check_branch
      %39 = sbr.rel (0) target = $region17
    $region16: #{tpu_custom_call.1} parent=1 // pred_region
      _
    $region17: #{tpu_custom_call.1} parent=1 // pred_fallthru
      _
    // Predicated region
    $region18: #{tpu_custom_call.1} parent=1 // pred_check
      _
    $region19: #{tpu_custom_call.1} parent=1 // pred_check_branch
      %41 = sbr.rel (0) target = $region21
    $region20: #{tpu_custom_call.1} parent=1 // pred_region
      %42 = dma.done [#allocation4], 1024
    $region21: #{tpu_custom_call.1} parent=1 // pred_fallthru
      _
    // Predicated region
    $region22: #{tpu_custom_call.1} parent=1 // pred_check
      _
    $region23: #{tpu_custom_call.1} parent=1 // pred_check_branch
      %44 = sbr.rel (0) target = $region25
    $region24: #{tpu_custom_call.1} parent=1 // pred_region
      %45 = dma.done [#allocation7], 2048
    $region25: #{tpu_custom_call.1} parent=1 // pred_fallthru
      _
    %p46 = scmp.eq.s32.totalorder 0, 0
    // Predicated region
    $region26: #{tpu_custom_call.1} parent=1 // pred_check
      %p47 = pneg %p46
    $region27: #{tpu_custom_call.1} parent=1 // pred_check_branch
      %49 = sbr.rel (%p47) target = $region29
    $region28: #{tpu_custom_call.1} parent=1 // pred_region
      %v50 = vld [vmem:[%s3] sm:$0xff]
      %51 = vst [vmem:[#allocation2] sm:$0xff] %v50
    $region29: #{tpu_custom_call.1} parent=1 // pred_fallthru
      _
    %v52 = vld [vmem:[#allocation6] sm:$0xff]
    %v53 = vld [vmem:[#allocation6 + $0x8] sm:$0xff]
    %v54 = vld [vmem:[#allocation6 + $0x10] sm:$0xff]
    %v55 = vld [vmem:[#allocation6 + $0x18] sm:$0xff]
    %v56 = vld [vmem:[#allocation6 + $0x20] sm:$0xff]
    %v57 = vld [vmem:[#allocation6 + $0x28] sm:$0xff]
    %v58 = vld [vmem:[#allocation6 + $0x30] sm:$0xff]
    %v59 = vld [vmem:[#allocation6 + $0x38] sm:$0xff]
    %v60 = vld [vmem:[#allocation6 + $0x40] sm:$0xff]
    %v61 = vld [vmem:[#allocation6 + $0x48] sm:$0xff]
    %v62 = vld [vmem:[#allocation6 + $0x50] sm:$0xff]
    %v63 = vld [vmem:[#allocation6 + $0x58] sm:$0xff]
    %v64 = vld [vmem:[#allocation6 + $0x60] sm:$0xff]
    %v65 = vld [vmem:[#allocation6 + $0x68] sm:$0xff]
    %v66 = vld [vmem:[#allocation6 + $0x70] sm:$0xff]
    %v67 = vld [vmem:[#allocation6 + $0x78] sm:$0xff]
    %v68 = vld [vmem:[%s2] sm:$0x1]
    %v70 = vlaneseq
    %v71 = vshrl.u32 %v70, 7
    %v72 = vsub.s32 0, %v71
    %v73 = vrot.slane %v68, %v72
    %v75 = vld [vmem:[#allocation2] sm:$0xff]
    %v76 = vld [vmem:[#allocation3] sm:$0xff]
    %v77 = vtanh.pop %v75
    %78 = vmatprep.subr.mxu0 0.0
    %79 = vmatpush1.msra.mxu0 %v52
    %80 = vmatprep.subr.mxu0 0.0
    %81 = vmatpush1.msra.mxu0 %v53
    %82 = vmatprep.subr.mxu0 0.0
    %83 = vmatpush1.msra.mxu0 %v54
    %84 = vmatprep.subr.mxu0 0.0
    %85 = vmatpush1.msra.mxu0 %v55
    %86 = vmatprep.subr.mxu0 0.0
    %87 = vmatpush1.msra.mxu0 %v56
    %88 = vmatprep.subr.mxu0 0.0
    %89 = vmatpush1.msra.mxu0 %v57
    %90 = vmatprep.subr.mxu0 0.0
    %91 = vmatpush1.msra.mxu0 %v58
    %92 = vmatprep.subr.mxu0 0.0
    %93 = vmatpush1.msra.mxu0 %v59
    %94 = vmatprep.subr.mxu0 0.0
    %95 = vmatpush1.msra.mxu0 %v60
    %96 = vmatprep.subr.mxu0 0.0
    %97 = vmatpush1.msra.mxu0 %v61
    %98 = vmatprep.subr.mxu0 0.0
    %99 = vmatpush1.msra.mxu0 %v62
    %100 = vmatprep.subr.mxu0 0.0
    %101 = vmatpush1.msra.mxu0 %v63
    %102 = vmatprep.subr.mxu0 0.0
    %103 = vmatpush1.msra.mxu0 %v64
    %104 = vmatprep.subr.mxu0 0.0
    %105 = vmatpush1.msra.mxu0 %v65
    %106 = vmatprep.subr.mxu0 0.0
    %107 = vmatpush1.msra.mxu0 %v66
    %108 = vmatprep.subr.mxu0 0.0
    %109 = vmatpush1.msra.mxu0 %v67
    %110 = vmatprep.subr.mxu0 0.0
    %111 = vmatpush1.msra.mxu0 0.0
    %112 = vmatprep.subr.mxu0 0.0
    %113 = vmatpush1.msra.mxu0 0.0
    %114 = vmatprep.subr.mxu0 0.0
    %115 = vmatpush1.msra.mxu0 0.0
    %116 = vmatprep.subr.mxu0 0.0
    %117 = vmatpush1.msra.mxu0 0.0
    %118 = vmatprep.subr.mxu0 0.0
    %119 = vmatpush1.msra.mxu0 0.0
    %120 = vmatprep.subr.mxu0 0.0
    %121 = vmatpush1.msra.mxu0 0.0
    %122 = vmatprep.subr.mxu0 0.0
    %123 = vmatpush1.msra.mxu0 0.0
    %124 = vmatprep.subr.mxu0 0.0
    %125 = vmatpush1.msra.mxu0 0.0
    %126 = vmatprep.subr.mxu0 0.0
    %127 = vmatpush1.msra.mxu0 0.0
    %128 = vmatprep.subr.mxu0 0.0
    %129 = vmatpush1.msra.mxu0 0.0
    %130 = vmatprep.subr.mxu0 0.0
    %131 = vmatpush1.msra.mxu0 0.0
    %132 = vmatprep.subr.mxu0 0.0
    %133 = vmatpush1.msra.mxu0 0.0
    %134 = vmatprep.subr.mxu0 0.0
    %135 = vmatpush1.msra.mxu0 0.0
    %136 = vmatprep.subr.mxu0 0.0
    %137 = vmatpush1.msra.mxu0 0.0
    %138 = vmatprep.subr.mxu0 0.0
    %139 = vmatpush1.msra.mxu0 0.0
    %140 = vmatprep.subr.mxu0 0.0
    %141 = vmatpush1.msra.mxu0 0.0
    %142 = vmatprep.mubr.f32.mxu0 0.0
    %143 = vmatmul.mubr.f32.gmra.mrb[0].mxu0 %v77
    %v144 = vpop.f32.mrb[0].mxu0
    %v145 = vadd.f32 0.0, %v144
    %v146 = vpop.f32.mrb[0].mxu0
    %147 = vdwg.mxu0
    %v148 = vmul.f32 %v73, %v75
    %v149 = vadd.f32 %v148, %v76
    %v150 = vadd.f32 %v149, %v145
    %151 = vst [vmem:[#allocation8] sm:$0xff] %v150
    %s152 = scalar_lea.vmem [#allocation3], 8
    %v153 = vld [vmem:[%s152] sm:$0xff]
    %v154 = vtanh.pop %v150
    %155 = vmatprep.subr.mxu0 0.0
    %156 = vmatpush1.msra.mxu0 %v52
    %157 = vmatprep.subr.mxu0 0.0
    %158 = vmatpush1.msra.mxu0 %v53
    %159 = vmatprep.subr.mxu0 0.0
    %160 = vmatpush1.msra.mxu0 %v54
    %161 = vmatprep.subr.mxu0 0.0
    %162 = vmatpush1.msra.mxu0 %v55
    %163 = vmatprep.subr.mxu0 0.0
    %164 = vmatpush1.msra.mxu0 %v56
    %165 = vmatprep.subr.mxu0 0.0
    %166 = vmatpush1.msra.mxu0 %v57
    %167 = vmatprep.subr.mxu0 0.0
    %168 = vmatpush1.msra.mxu0 %v58
    %169 = vmatprep.subr.mxu0 0.0
    %170 = vmatpush1.msra.mxu0 %v59
    %171 = vmatprep.subr.mxu0 0.0
    %172 = vmatpush1.msra.mxu0 %v60
    %173 = vmatprep.subr.mxu0 0.0
    %174 = vmatpush1.msra.mxu0 %v61
    %175 = vmatprep.subr.mxu0 0.0
    %176 = vmatpush1.msra.mxu0 %v62
    %177 = vmatprep.subr.mxu0 0.0
    %178 = vmatpush1.msra.mxu0 %v63
    %179 = vmatprep.subr.mxu0 0.0
    %180 = vmatpush1.msra.mxu0 %v64
    %181 = vmatprep.subr.mxu0 0.0
    %182 = vmatpush1.msra.mxu0 %v65
    %183 = vmatprep.subr.mxu0 0.0
    %184 = vmatpush1.msra.mxu0 %v66
    %185 = vmatprep.subr.mxu0 0.0
    %186 = vmatpush1.msra.mxu0 %v67
    %187 = vmatprep.subr.mxu0 0.0
    %188 = vmatpush1.msra.mxu0 0.0
    %189 = vmatprep.subr.mxu0 0.0
    %190 = vmatpush1.msra.mxu0 0.0
    %191 = vmatprep.subr.mxu0 0.0
    %192 = vmatpush1.msra.mxu0 0.0
    %193 = vmatprep.subr.mxu0 0.0
    %194 = vmatpush1.msra.mxu0 0.0
    %195 = vmatprep.subr.mxu0 0.0
    %196 = vmatpush1.msra.mxu0 0.0
    %197 = vmatprep.subr.mxu0 0.0
    %198 = vmatpush1.msra.mxu0 0.0
    %199 = vmatprep.subr.mxu0 0.0
    %200 = vmatpush1.msra.mxu0 0.0
    %201 = vmatprep.subr.mxu0 0.0
    %202 = vmatpush1.msra.mxu0 0.0
    %203 = vmatprep.subr.mxu0 0.0
    %204 = vmatpush1.msra.mxu0 0.0
    %205 = vmatprep.subr.mxu0 0.0
    %206 = vmatpush1.msra.mxu0 0.0
    %207 = vmatprep.subr.mxu0 0.0
    %208 = vmatpush1.msra.mxu0 0.0
    %209 = vmatprep.subr.mxu0 0.0
    %210 = vmatpush1.msra.mxu0 0.0
    %211 = vmatprep.subr.mxu0 0.0
    %212 = vmatpush1.msra.mxu0 0.0
    %213 = vmatprep.subr.mxu0 0.0
    %214 = vmatpush1.msra.mxu0 0.0
    %215 = vmatprep.subr.mxu0 0.0
    %216 = vmatpush1.msra.mxu0 0.0
    %217 = vmatprep.subr.mxu0 0.0
    %218 = vmatpush1.msra.mxu0 0.0
    %219 = vmatprep.mubr.f32.mxu0 0.0
    %220 = vmatmul.mubr.f32.gmra.mrb[0].mxu0 %v154
    %v221 = vpop.f32.mrb[0].mxu0
    %v222 = vadd.f32 0.0, %v221
    %v223 = vpop.f32.mrb[0].mxu0
    %224 = vdwg.mxu0
    %v225 = vmul.f32 %v73, %v150
    %v226 = vadd.f32 %v225, %v153
    %v227 = vadd.f32 %v226, %v222
    %s228 = scalar_lea.vmem [#allocation8], 8
    %229 = vst [vmem:[%s228] sm:$0xff] %v227
    %s230 = scalar_lea.vmem [#allocation3], 16
    %v231 = vld [vmem:[%s230] sm:$0xff]
    %v232 = vtanh.pop %v227
    %233 = vmatprep.subr.mxu0 0.0
    %234 = vmatpush1.msra.mxu0 %v52
    %235 = vmatprep.subr.mxu0 0.0
    %236 = vmatpush1.msra.mxu0 %v53
    %237 = vmatprep.subr.mxu0 0.0
    %238 = vmatpush1.msra.mxu0 %v54
    %239 = vmatprep.subr.mxu0 0.0
    %240 = vmatpush1.msra.mxu0 %v55
    %241 = vmatprep.subr.mxu0 0.0
    %242 = vmatpush1.msra.mxu0 %v56
    %243 = vmatprep.subr.mxu0 0.0
    %244 = vmatpush1.msra.mxu0 %v57
    %245 = vmatprep.subr.mxu0 0.0
    %246 = vmatpush1.msra.mxu0 %v58
    %247 = vmatprep.subr.mxu0 0.0
    %248 = vmatpush1.msra.mxu0 %v59
    %249 = vmatprep.subr.mxu0 0.0
    %250 = vmatpush1.msra.mxu0 %v60
    %251 = vmatprep.subr.mxu0 0.0
    %252 = vmatpush1.msra.mxu0 %v61
    %253 = vmatprep.subr.mxu0 0.0
    %254 = vmatpush1.msra.mxu0 %v62
    %255 = vmatprep.subr.mxu0 0.0
    %256 = vmatpush1.msra.mxu0 %v63
    %257 = vmatprep.subr.mxu0 0.0
    %258 = vmatpush1.msra.mxu0 %v64
    %259 = vmatprep.subr.mxu0 0.0
    %260 = vmatpush1.msra.mxu0 %v65
    %261 = vmatprep.subr.mxu0 0.0
    %262 = vmatpush1.msra.mxu0 %v66
    %263 = vmatprep.subr.mxu0 0.0
    %264 = vmatpush1.msra.mxu0 %v67
    %265 = vmatprep.subr.mxu0 0.0
    %266 = vmatpush1.msra.mxu0 0.0
    %267 = vmatprep.subr.mxu0 0.0
    %268 = vmatpush1.msra.mxu0 0.0
    %269 = vmatprep.subr.mxu0 0.0
    %270 = vmatpush1.msra.mxu0 0.0
    %271 = vmatprep.subr.mxu0 0.0
    %272 = vmatpush1.msra.mxu0 0.0
    %273 = vmatprep.subr.mxu0 0.0
    %274 = vmatpush1.msra.mxu0 0.0
    %275 = vmatprep.subr.mxu0 0.0
    %276 = vmatpush1.msra.mxu0 0.0
    %277 = vmatprep.subr.mxu0 0.0
    %278 = vmatpush1.msra.mxu0 0.0
    %279 = vmatprep.subr.mxu0 0.0
    %280 = vmatpush1.msra.mxu0 0.0
    %281 = vmatprep.subr.mxu0 0.0
    %282 = vmatpush1.msra.mxu0 0.0
    %283 = vmatprep.subr.mxu0 0.0
    %284 = vmatpush1.msra.mxu0 0.0
    %285 = vmatprep.subr.mxu0 0.0
    %286 = vmatpush1.msra.mxu0 0.0
    %287 = vmatprep.subr.mxu0 0.0
    %288 = vmatpush1.msra.mxu0 0.0
    %289 = vmatprep.subr.mxu0 0.0
    %290 = vmatpush1.msra.mxu0 0.0
    %291 = vmatprep.subr.mxu0 0.0
    %292 = vmatpush1.msra.mxu0 0.0
    %293 = vmatprep.subr.mxu0 0.0
    %294 = vmatpush1.msra.mxu0 0.0
    %295 = vmatprep.subr.mxu0 0.0
    %296 = vmatpush1.msra.mxu0 0.0
    %297 = vmatprep.mubr.f32.mxu0 0.0
    %298 = vmatmul.mubr.f32.gmra.mrb[0].mxu0 %v232
    %v299 = vpop.f32.mrb[0].mxu0
    %v300 = vadd.f32 0.0, %v299
    %v301 = vpop.f32.mrb[0].mxu0
    %302 = vdwg.mxu0
    %v303 = vmul.f32 %v73, %v227
    %v304 = vadd.f32 %v303, %v231
    %v305 = vadd.f32 %v304, %v300
    %s306 = scalar_lea.vmem [#allocation8], 16
    %307 = vst [vmem:[%s306] sm:$0xff] %v305
    %s308 = scalar_lea.vmem [#allocation3], 24
    %v309 = vld [vmem:[%s308] sm:$0xff]
    %v310 = vtanh.pop %v305
    %311 = vmatprep.subr.mxu0 0.0
    %312 = vmatpush1.msra.mxu0 %v52
    %313 = vmatprep.subr.mxu0 0.0
    %314 = vmatpush1.msra.mxu0 %v53
    %315 = vmatprep.subr.mxu0 0.0
    %316 = vmatpush1.msra.mxu0 %v54
    %317 = vmatprep.subr.mxu0 0.0
    %318 = vmatpush1.msra.mxu0 %v55
    %319 = vmatprep.subr.mxu0 0.0
    %320 = vmatpush1.msra.mxu0 %v56
    %321 = vmatprep.subr.mxu0 0.0
    %322 = vmatpush1.msra.mxu0 %v57
    %323 = vmatprep.subr.mxu0 0.0
    %324 = vmatpush1.msra.mxu0 %v58
    %325 = vmatprep.subr.mxu0 0.0
    %326 = vmatpush1.msra.mxu0 %v59
    %327 = vmatprep.subr.mxu0 0.0
    %328 = vmatpush1.msra.mxu0 %v60
    %329 = vmatprep.subr.mxu0 0.0
    %330 = vmatpush1.msra.mxu0 %v61
    %331 = vmatprep.subr.mxu0 0.0
    %332 = vmatpush1.msra.mxu0 %v62
    %333 = vmatprep.subr.mxu0 0.0
    %334 = vmatpush1.msra.mxu0 %v63
    %335 = vmatprep.subr.mxu0 0.0
    %336 = vmatpush1.msra.mxu0 %v64
    %337 = vmatprep.subr.mxu0 0.0
    %338 = vmatpush1.msra.mxu0 %v65
    %339 = vmatprep.subr.mxu0 0.0
    %340 = vmatpush1.msra.mxu0 %v66
    %341 = vmatprep.subr.mxu0 0.0
    %342 = vmatpush1.msra.mxu0 %v67
    %343 = vmatprep.subr.mxu0 0.0
    %344 = vmatpush1.msra.mxu0 0.0
    %345 = vmatprep.subr.mxu0 0.0
    %346 = vmatpush1.msra.mxu0 0.0
    %347 = vmatprep.subr.mxu0 0.0
    %348 = vmatpush1.msra.mxu0 0.0
    %349 = vmatprep.subr.mxu0 0.0
    %350 = vmatpush1.msra.mxu0 0.0
    %351 = vmatprep.subr.mxu0 0.0
    %352 = vmatpush1.msra.mxu0 0.0
    %353 = vmatprep.subr.mxu0 0.0
    %354 = vmatpush1.msra.mxu0 0.0
    %355 = vmatprep.subr.mxu0 0.0
    %356 = vmatpush1.msra.mxu0 0.0
    %357 = vmatprep.subr.mxu0 0.0
    %358 = vmatpush1.msra.mxu0 0.0
    %359 = vmatprep.subr.mxu0 0.0
    %360 = vmatpush1.msra.mxu0 0.0
    %361 = vmatprep.subr.mxu0 0.0
    %362 = vmatpush1.msra.mxu0 0.0
    %363 = vmatprep.subr.mxu0 0.0
    %364 = vmatpush1.msra.mxu0 0.0
    %365 = vmatprep.subr.mxu0 0.0
    %366 = vmatpush1.msra.mxu0 0.0
    %367 = vmatprep.subr.mxu0 0.0
    %368 = vmatpush1.msra.mxu0 0.0
    %369 = vmatprep.subr.mxu0 0.0
    %370 = vmatpush1.msra.mxu0 0.0
    %371 = vmatprep.subr.mxu0 0.0
    %372 = vmatpush1.msra.mxu0 0.0
    %373 = vmatprep.subr.mxu0 0.0
    %374 = vmatpush1.msra.mxu0 0.0
    %375 = vmatprep.mubr.f32.mxu0 0.0
    %376 = vmatmul.mubr.f32.gmra.mrb[0].mxu0 %v310
    %v377 = vpop.f32.mrb[0].mxu0
    %v378 = vadd.f32 0.0, %v377
    %v379 = vpop.f32.mrb[0].mxu0
    %380 = vdwg.mxu0
    %v381 = vmul.f32 %v73, %v305
    %v382 = vadd.f32 %v381, %v309
    %v383 = vadd.f32 %v382, %v378
    %s384 = scalar_lea.vmem [#allocation8], 24
    %385 = vst [vmem:[%s384] sm:$0xff] %v383
    %s386 = scalar_lea.vmem [#allocation3], 32
    %v387 = vld [vmem:[%s386] sm:$0xff]
    %v388 = vtanh.pop %v383
    %389 = vmatprep.subr.mxu0 0.0
    %390 = vmatpush1.msra.mxu0 %v52
    %391 = vmatprep.subr.mxu0 0.0
    %392 = vmatpush1.msra.mxu0 %v53
    %393 = vmatprep.subr.mxu0 0.0
    %394 = vmatpush1.msra.mxu0 %v54
    %395 = vmatprep.subr.mxu0 0.0
    %396 = vmatpush1.msra.mxu0 %v55
    %397 = vmatprep.subr.mxu0 0.0
    %398 = vmatpush1.msra.mxu0 %v56
    %399 = vmatprep.subr.mxu0 0.0
    %400 = vmatpush1.msra.mxu0 %v57
    %401 = vmatprep.subr.mxu0 0.0
    %402 = vmatpush1.msra.mxu0 %v58
    %403 = vmatprep.subr.mxu0 0.0
    %404 = vmatpush1.msra.mxu0 %v59
    %405 = vmatprep.subr.mxu0 0.0
    %406 = vmatpush1.msra.mxu0 %v60
    %407 = vmatprep.subr.mxu0 0.0
    %408 = vmatpush1.msra.mxu0 %v61
    %409 = vmatprep.subr.mxu0 0.0
    %410 = vmatpush1.msra.mxu0 %v62
    %411 = vmatprep.subr.mxu0 0.0
    %412 = vmatpush1.msra.mxu0 %v63
    %413 = vmatprep.subr.mxu0 0.0
    %414 = vmatpush1.msra.mxu0 %v64
    %415 = vmatprep.subr.mxu0 0.0
    %416 = vmatpush1.msra.mxu0 %v65
    %417 = vmatprep.subr.mxu0 0.0
    %418 = vmatpush1.msra.mxu0 %v66
    %419 = vmatprep.subr.mxu0 0.0
    %420 = vmatpush1.msra.mxu0 %v67
    %421 = vmatprep.subr.mxu0 0.0
    %422 = vmatpush1.msra.mxu0 0.0
    %423 = vmatprep.subr.mxu0 0.0
    %424 = vmatpush1.msra.mxu0 0.0
    %425 = vmatprep.subr.mxu0 0.0
    %426 = vmatpush1.msra.mxu0 0.0
    %427 = vmatprep.subr.mxu0 0.0
    %428 = vmatpush1.msra.mxu0 0.0
    %429 = vmatprep.subr.mxu0 0.0
    %430 = vmatpush1.msra.mxu0 0.0
    %431 = vmatprep.subr.mxu0 0.0
    %432 = vmatpush1.msra.mxu0 0.0
    %433 = vmatprep.subr.mxu0 0.0
    %434 = vmatpush1.msra.mxu0 0.0
    %435 = vmatprep.subr.mxu0 0.0
    %436 = vmatpush1.msra.mxu0 0.0
    %437 = vmatprep.subr.mxu0 0.0
    %438 = vmatpush1.msra.mxu0 0.0
    %439 = vmatprep.subr.mxu0 0.0
    %440 = vmatpush1.msra.mxu0 0.0
    %441 = vmatprep.subr.mxu0 0.0
    %442 = vmatpush1.msra.mxu0 0.0
    %443 = vmatprep.subr.mxu0 0.0
    %444 = vmatpush1.msra.mxu0 0.0
    %445 = vmatprep.subr.mxu0 0.0
    %446 = vmatpush1.msra.mxu0 0.0
    %447 = vmatprep.subr.mxu0 0.0
    %448 = vmatpush1.msra.mxu0 0.0
    %449 = vmatprep.subr.mxu0 0.0
    %450 = vmatpush1.msra.mxu0 0.0
    %451 = vmatprep.subr.mxu0 0.0
    %452 = vmatpush1.msra.mxu0 0.0
    %453 = vmatprep.mubr.f32.mxu0 0.0
    %454 = vmatmul.mubr.f32.gmra.mrb[0].mxu0 %v388
    %v455 = vpop.f32.mrb[0].mxu0
    %v456 = vadd.f32 0.0, %v455
    %v457 = vpop.f32.mrb[0].mxu0
    %458 = vdwg.mxu0
    %v459 = vmul.f32 %v73, %v383
    %v460 = vadd.f32 %v459, %v387
    %v461 = vadd.f32 %v460, %v456
    %s462 = scalar_lea.vmem [#allocation8], 32
    %463 = vst [vmem:[%s462] sm:$0xff] %v461
    %s464 = scalar_lea.vmem [#allocation3], 40
    %v465 = vld [vmem:[%s464] sm:$0xff]
    %v466 = vtanh.pop %v461
    %467 = vmatprep.subr.mxu0 0.0
    %468 = vmatpush1.msra.mxu0 %v52
    %469 = vmatprep.subr.mxu0 0.0
    %470 = vmatpush1.msra.mxu0 %v53
    %471 = vmatprep.subr.mxu0 0.0
    %472 = vmatpush1.msra.mxu0 %v54
    %473 = vmatprep.subr.mxu0 0.0
    %474 = vmatpush1.msra.mxu0 %v55
    %475 = vmatprep.subr.mxu0 0.0
    %476 = vmatpush1.msra.mxu0 %v56
    %477 = vmatprep.subr.mxu0 0.0
    %478 = vmatpush1.msra.mxu0 %v57
    %479 = vmatprep.subr.mxu0 0.0
    %480 = vmatpush1.msra.mxu0 %v58
    %481 = vmatprep.subr.mxu0 0.0
    %482 = vmatpush1.msra.mxu0 %v59
    %483 = vmatprep.subr.mxu0 0.0
    %484 = vmatpush1.msra.mxu0 %v60
    %485 = vmatprep.subr.mxu0 0.0
    %486 = vmatpush1.msra.mxu0 %v61
    %487 = vmatprep.subr.mxu0 0.0
    %488 = vmatpush1.msra.mxu0 %v62
    %489 = vmatprep.subr.mxu0 0.0
    %490 = vmatpush1.msra.mxu0 %v63
    %491 = vmatprep.subr.mxu0 0.0
    %492 = vmatpush1.msra.mxu0 %v64
    %493 = vmatprep.subr.mxu0 0.0
    %494 = vmatpush1.msra.mxu0 %v65
    %495 = vmatprep.subr.mxu0 0.0
    %496 = vmatpush1.msra.mxu0 %v66
    %497 = vmatprep.subr.mxu0 0.0
    %498 = vmatpush1.msra.mxu0 %v67
    %499 = vmatprep.subr.mxu0 0.0
    %500 = vmatpush1.msra.mxu0 0.0
    %501 = vmatprep.subr.mxu0 0.0
    %502 = vmatpush1.msra.mxu0 0.0
    %503 = vmatprep.subr.mxu0 0.0
    %504 = vmatpush1.msra.mxu0 0.0
    %505 = vmatprep.subr.mxu0 0.0
    %506 = vmatpush1.msra.mxu0 0.0
    %507 = vmatprep.subr.mxu0 0.0
    %508 = vmatpush1.msra.mxu0 0.0
    %509 = vmatprep.subr.mxu0 0.0
    %510 = vmatpush1.msra.mxu0 0.0
    %511 = vmatprep.subr.mxu0 0.0
    %512 = vmatpush1.msra.mxu0 0.0
    %513 = vmatprep.subr.mxu0 0.0
    %514 = vmatpush1.msra.mxu0 0.0
    %515 = vmatprep.subr.mxu0 0.0
    %516 = vmatpush1.msra.mxu0 0.0
    %517 = vmatprep.subr.mxu0 0.0
    %518 = vmatpush1.msra.mxu0 0.0
    %519 = vmatprep.subr.mxu0 0.0
    %520 = vmatpush1.msra.mxu0 0.0
    %521 = vmatprep.subr.mxu0 0.0
    %522 = vmatpush1.msra.mxu0 0.0
    %523 = vmatprep.subr.mxu0 0.0
    %524 = vmatpush1.msra.mxu0 0.0
    %525 = vmatprep.subr.mxu0 0.0
    %526 = vmatpush1.msra.mxu0 0.0
    %527 = vmatprep.subr.mxu0 0.0
    %528 = vmatpush1.msra.mxu0 0.0
    %529 = vmatprep.subr.mxu0 0.0
    %530 = vmatpush1.msra.mxu0 0.0
    %531 = vmatprep.mubr.f32.mxu0 0.0
    %532 = vmatmul.mubr.f32.gmra.mrb[0].mxu0 %v466
    %v533 = vpop.f32.mrb[0].mxu0
    %v534 = vadd.f32 0.0, %v533
    %v535 = vpop.f32.mrb[0].mxu0
    %536 = vdwg.mxu0
    %v537 = vmul.f32 %v73, %v461
    %v538 = vadd.f32 %v537, %v465
    %v539 = vadd.f32 %v538, %v534
    %s540 = scalar_lea.vmem [#allocation8], 40
    %541 = vst [vmem:[%s540] sm:$0xff] %v539
    %s542 = scalar_lea.vmem [#allocation3], 48
    %v543 = vld [vmem:[%s542] sm:$0xff]
    %v544 = vtanh.pop %v539
    %545 = vmatprep.subr.mxu0 0.0
    %546 = vmatpush1.msra.mxu0 %v52
    %547 = vmatprep.subr.mxu0 0.0
    %548 = vmatpush1.msra.mxu0 %v53
    %549 = vmatprep.subr.mxu0 0.0
    %550 = vmatpush1.msra.mxu0 %v54
    %551 = vmatprep.subr.mxu0 0.0
    %552 = vmatpush1.msra.mxu0 %v55
    %553 = vmatprep.subr.mxu0 0.0
    %554 = vmatpush1.msra.mxu0 %v56
    %555 = vmatprep.subr.mxu0 0.0
    %556 = vmatpush1.msra.mxu0 %v57
    %557 = vmatprep.subr.mxu0 0.0
    %558 = vmatpush1.msra.mxu0 %v58
    %559 = vmatprep.subr.mxu0 0.0
    %560 = vmatpush1.msra.mxu0 %v59
    %561 = vmatprep.subr.mxu0 0.0
    %562 = vmatpush1.msra.mxu0 %v60
    %563 = vmatprep.subr.mxu0 0.0
    %564 = vmatpush1.msra.mxu0 %v61
    %565 = vmatprep.subr.mxu0 0.0
    %566 = vmatpush1.msra.mxu0 %v62
    %567 = vmatprep.subr.mxu0 0.0
    %568 = vmatpush1.msra.mxu0 %v63
    %569 = vmatprep.subr.mxu0 0.0
    %570 = vmatpush1.msra.mxu0 %v64
    %571 = vmatprep.subr.mxu0 0.0
    %572 = vmatpush1.msra.mxu0 %v65
    %573 = vmatprep.subr.mxu0 0.0
    %574 = vmatpush1.msra.mxu0 %v66
    %575 = vmatprep.subr.mxu0 0.0
    %576 = vmatpush1.msra.mxu0 %v67
    %577 = vmatprep.subr.mxu0 0.0
    %578 = vmatpush1.msra.mxu0 0.0
    %579 = vmatprep.subr.mxu0 0.0
    %580 = vmatpush1.msra.mxu0 0.0
    %581 = vmatprep.subr.mxu0 0.0
    %582 = vmatpush1.msra.mxu0 0.0
    %583 = vmatprep.subr.mxu0 0.0
    %584 = vmatpush1.msra.mxu0 0.0
    %585 = vmatprep.subr.mxu0 0.0
    %586 = vmatpush1.msra.mxu0 0.0
    %587 = vmatprep.subr.mxu0 0.0
    %588 = vmatpush1.msra.mxu0 0.0
    %589 = vmatprep.subr.mxu0 0.0
    %590 = vmatpush1.msra.mxu0 0.0
    %591 = vmatprep.subr.mxu0 0.0
    %592 = vmatpush1.msra.mxu0 0.0
    %593 = vmatprep.subr.mxu0 0.0
    %594 = vmatpush1.msra.mxu0 0.0
    %595 = vmatprep.subr.mxu0 0.0
    %596 = vmatpush1.msra.mxu0 0.0
    %597 = vmatprep.subr.mxu0 0.0
    %598 = vmatpush1.msra.mxu0 0.0
    %599 = vmatprep.subr.mxu0 0.0
    %600 = vmatpush1.msra.mxu0 0.0
    %601 = vmatprep.subr.mxu0 0.0
    %602 = vmatpush1.msra.mxu0 0.0
    %603 = vmatprep.subr.mxu0 0.0
    %604 = vmatpush1.msra.mxu0 0.0
    %605 = vmatprep.subr.mxu0 0.0
    %606 = vmatpush1.msra.mxu0 0.0
    %607 = vmatprep.subr.mxu0 0.0
    %608 = vmatpush1.msra.mxu0 0.0
    %609 = vmatprep.mubr.f32.mxu0 0.0
    %610 = vmatmul.mubr.f32.gmra.mrb[0].mxu0 %v544
    %v611 = vpop.f32.mrb[0].mxu0
    %v612 = vadd.f32 0.0, %v611
    %v613 = vpop.f32.mrb[0].mxu0
    %614 = vdwg.mxu0
    %v615 = vmul.f32 %v73, %v539
    %v616 = vadd.f32 %v615, %v543
    %v617 = vadd.f32 %v616, %v612
    %s618 = scalar_lea.vmem [#allocation8], 48
    %619 = vst [vmem:[%s618] sm:$0xff] %v617
    %s620 = scalar_lea.vmem [#allocation3], 56
    %v621 = vld [vmem:[%s620] sm:$0xff]
    %v622 = vtanh.pop %v617
    %623 = vmatprep.subr.mxu0 0.0
    %624 = vmatpush1.msra.mxu0 %v52
    %625 = vmatprep.subr.mxu0 0.0
    %626 = vmatpush1.msra.mxu0 %v53
    %627 = vmatprep.subr.mxu0 0.0
    %628 = vmatpush1.msra.mxu0 %v54
    %629 = vmatprep.subr.mxu0 0.0
    %630 = vmatpush1.msra.mxu0 %v55
    %631 = vmatprep.subr.mxu0 0.0
    %632 = vmatpush1.msra.mxu0 %v56
    %633 = vmatprep.subr.mxu0 0.0
    %634 = vmatpush1.msra.mxu0 %v57
    %635 = vmatprep.subr.mxu0 0.0
    %636 = vmatpush1.msra.mxu0 %v58
    %637 = vmatprep.subr.mxu0 0.0
    %638 = vmatpush1.msra.mxu0 %v59
    %639 = vmatprep.subr.mxu0 0.0
    %640 = vmatpush1.msra.mxu0 %v60
    %641 = vmatprep.subr.mxu0 0.0
    %642 = vmatpush1.msra.mxu0 %v61
    %643 = vmatprep.subr.mxu0 0.0
    %644 = vmatpush1.msra.mxu0 %v62
    %645 = vmatprep.subr.mxu0 0.0
    %646 = vmatpush1.msra.mxu0 %v63
    %647 = vmatprep.subr.mxu0 0.0
    %648 = vmatpush1.msra.mxu0 %v64
    %649 = vmatprep.subr.mxu0 0.0
    %650 = vmatpush1.msra.mxu0 %v65
    %651 = vmatprep.subr.mxu0 0.0
    %652 = vmatpush1.msra.mxu0 %v66
    %653 = vmatprep.subr.mxu0 0.0
    %654 = vmatpush1.msra.mxu0 %v67
    %655 = vmatprep.subr.mxu0 0.0
    %656 = vmatpush1.msra.mxu0 0.0
    %657 = vmatprep.subr.mxu0 0.0
    %658 = vmatpush1.msra.mxu0 0.0
    %659 = vmatprep.subr.mxu0 0.0
    %660 = vmatpush1.msra.mxu0 0.0
    %661 = vmatprep.subr.mxu0 0.0
    %662 = vmatpush1.msra.mxu0 0.0
    %663 = vmatprep.subr.mxu0 0.0
    %664 = vmatpush1.msra.mxu0 0.0
    %665 = vmatprep.subr.mxu0 0.0
    %666 = vmatpush1.msra.mxu0 0.0
    %667 = vmatprep.subr.mxu0 0.0
    %668 = vmatpush1.msra.mxu0 0.0
    %669 = vmatprep.subr.mxu0 0.0
    %670 = vmatpush1.msra.mxu0 0.0
    %671 = vmatprep.subr.mxu0 0.0
    %672 = vmatpush1.msra.mxu0 0.0
    %673 = vmatprep.subr.mxu0 0.0
    %674 = vmatpush1.msra.mxu0 0.0
    %675 = vmatprep.subr.mxu0 0.0
    %676 = vmatpush1.msra.mxu0 0.0
    %677 = vmatprep.subr.mxu0 0.0
    %678 = vmatpush1.msra.mxu0 0.0
    %679 = vmatprep.subr.mxu0 0.0
    %680 = vmatpush1.msra.mxu0 0.0
    %681 = vmatprep.subr.mxu0 0.0
    %682 = vmatpush1.msra.mxu0 0.0
    %683 = vmatprep.subr.mxu0 0.0
    %684 = vmatpush1.msra.mxu0 0.0
    %685 = vmatprep.subr.mxu0 0.0
    %686 = vmatpush1.msra.mxu0 0.0
    %687 = vmatprep.mubr.f32.mxu0 0.0
    %688 = vmatmul.mubr.f32.gmra.mrb[0].mxu0 %v622
    %v689 = vpop.f32.mrb[0].mxu0
    %v690 = vadd.f32 0.0, %v689
    %v691 = vpop.f32.mrb[0].mxu0
    %692 = vdwg.mxu0
    %v693 = vmul.f32 %v73, %v617
    %v694 = vadd.f32 %v693, %v621
    %v695 = vadd.f32 %v694, %v690
    %s696 = scalar_lea.vmem [#allocation8], 56
    %697 = vst [vmem:[%s696] sm:$0xff] %v695
    %698 = vst [vmem:[#allocation2] sm:$0xff] %v695
    // Predicated region
    $region30: #{tpu_custom_call.1} parent=1 // pred_check
      _
    $region31: #{tpu_custom_call.1} parent=1 // pred_check_branch
      %700 = sbr.rel (0) target = $region33
    $region32: #{tpu_custom_call.1} parent=1 // pred_region
      %s702 = ssub.s32 1024, 1024
      %703 = vsyncadd [#allocation5], %s702
      %s704 = sshll.u32 [#allocation8], 4
      %s705 = int_to_ptr.vmem [resolvable:$true] %s704
      %710 = dma.vmem_to_hbm [thread:$0]  %s705, 1024, %s4, [#allocation5], 128, 128, 8
    $region33: #{tpu_custom_call.1} parent=1 // pred_fallthru
      _
    // Predicated region
    $region34: #{tpu_custom_call.1} parent=1 // pred_check
      _
    $region35: #{tpu_custom_call.1} parent=1 // pred_check_branch
      %712 = sbr.rel (0) target = $region37
    $region36: #{tpu_custom_call.1} parent=1 // pred_region
      %713 = dma.done [#allocation5], 1024
    $region37: #{tpu_custom_call.1} parent=1 // pred_fallthru
      _
    %714 = vsyncpa [#allocation4], 1
    %715 = vsyncpa [#allocation7], 1
    %716 = vsyncpa [#allocation5], 1

// kernel: tpu_custom_call.1
$region0: #{tpu_custom_call.1}
  #allocation0 [shape = 'u32[]', space=smem, size = 0x4, offset = 0x4, fixed_abs, tag = 'smem constant byte address 0x4 - core index']
  #allocation1 [shape = 'u32[144,128]{1,0:T(1,128)}', space=vmem, size = 0x12000, scoped, tag = 'internal scratch']
  #allocation2 [shape = 'f32[8,128]{1,0:T(8,128)}', space=vmem, size = 0x1000, scoped, tag = 'scratch operand']
  %s0 = inlined_call_operand.hbm [shape: f32[8,8,128], index: 0, kind: input, shape index: {}]
  %s1 = inlined_call_operand.hbm [shape: f32[128,128], index: 1, kind: input, shape index: {}]
  %s2 = inlined_call_operand.vmem [shape: f32[1,128], index: 2, kind: input, shape index: {}]
  %s3 = inlined_call_operand.vmem [shape: f32[8,128], index: 3, kind: input, shape index: {}]
  %s4 = inlined_call_operand.hbm [shape: f32[8,8,128], index: 4, kind: output, shape index: {}]
  %s5 = sld [smem:[#allocation0]]
  $region38: #{tpu_custom_call.1} parent=0
    _
  %s7 = ssub.s32 1, %s5
  %s8 = scalar_select 0, %s7, %s5
  $region1: #{tpu_custom_call.1} parent=0
    #allocation3 [shape = 'u8[32768]{0}', space=vmem, size = 0x8000, scoped, tag = 'input window, operand 0, single buffered']
    #allocation4 [shape = 's32[1]{0}', space=sflag, size = 0x4, scoped, tag = 'scoped memory for tpu_custom_call.1']
    #allocation5 [shape = 's32[1]{0}', space=sflag, size = 0x4, scoped, tag = 'scoped memory for tpu_custom_call.1']
    #allocation6 [shape = 'u8[65536]{0}', space=vmem, size = 0x10000, scoped, tag = 'input window, operand 1, single buffered']
    #allocation7 [shape = 's32[1]{0}', space=sflag, size = 0x4, scoped, tag = 'scoped memory for tpu_custom_call.1']
    #allocation8 [shape = 'u8[32768]{0}', space=vmem, size = 0x8000, scoped, tag = 'output window, operand 0, single buffered']
    %9 = vsyncpa [#allocation4], 0
    %10 = vsyncpa [#allocation7], 0
    %11 = vsyncpa [#allocation5], 0
    // Predicated region
    $region2: #{tpu_custom_call.1} parent=1 // pred_check
      _
    $region3: #{tpu_custom_call.1} parent=1 // pred_check_branch
      %13 = sbr.rel (0) target = $region5
    $region4: #{tpu_custom_call.1} parent=1 // pred_region
      %s15 = ssub.s32 1024, 1024
      %16 = vsyncadd [#allocation4], %s15
      %s17 = sshll.u32 [#allocation3], 4
      %s18 = int_to_ptr.vmem [resolvable:$true] %s17
      %23 = dma.hbm_to_vmem [thread:$0]  %s0, 1024, %s18, [#allocation4], 128, 128, 8
    $region5: #{tpu_custom_call.1} parent=1 // pred_fallthru
      _
    // Predicated region
    $region6: #{tpu_custom_call.1} parent=1 // pred_check
      _
    $region7: #{tpu_custom_call.1} parent=1 // pred_check_branch
      %25 = sbr.rel (0) target = $region9
    $region8: #{tpu_custom_call.1} parent=1 // pred_region
      %s27 = ssub.s32 2048, 2048
      %28 = vsyncadd [#allocation7], %s27
      %s29 = sshll.u32 [#allocation6], 4
      %s30 = int_to_ptr.vmem [resolvable:$true] %s29
      %35 = dma.hbm_to_vmem [thread:$0]  %s1, 2048, %s30, [#allocation7], 128, 128, 8
    $region9: #{tpu_custom_call.1} parent=1 // pred_fallthru
      _
    // Predicated region
    $region10: #{tpu_custom_call.1} parent=1 // pred_check
      _
    $region11: #{tpu_custom_call.1} parent=1 // pred_check_branch
      %37 = sbr.rel (0) target = $region13
    $region12: #{tpu_custom_call.1} parent=1 // pred_region
      _
    $region13: #{tpu_custom_call.1} parent=1 // pred_fallthru
      _
    // Predicated region
    $region14: #{tpu_custom_call.1} parent=1 // pred_check
      _
    $region15: #{tpu_custom_call.1} parent=1 // pred_check_branch
      %39 = sbr.rel (0) target = $region17
    $region16: #{tpu_custom_call.1} parent=1 // pred_region
      _
    $region17: #{tpu_custom_call.1} parent=1 // pred_fallthru
      _
    // Predicated region
    $region18: #{tpu_custom_call.1} parent=1 // pred_check
      _
    $region19: #{tpu_custom_call.1} parent=1 // pred_check_branch
      %41 = sbr.rel (0) target = $region21
    $region20: #{tpu_custom_call.1} parent=1 // pred_region
      %42 = dma.done [#allocation4], 1024
    $region21: #{tpu_custom_call.1} parent=1 // pred_fallthru
      _
    // Predicated region
    $region22: #{tpu_custom_call.1} parent=1 // pred_check
      _
    $region23: #{tpu_custom_call.1} parent=1 // pred_check_branch
      %44 = sbr.rel (0) target = $region25
    $region24: #{tpu_custom_call.1} parent=1 // pred_region
      %45 = dma.done [#allocation7], 2048
    $region25: #{tpu_custom_call.1} parent=1 // pred_fallthru
      _
    %p46 = scmp.eq.s32.totalorder 0, 0
    // Predicated region
    $region26: #{tpu_custom_call.1} parent=1 // pred_check
      %p47 = pneg %p46
    $region27: #{tpu_custom_call.1} parent=1 // pred_check_branch
      %49 = sbr.rel (%p47) target = $region29
    $region28: #{tpu_custom_call.1} parent=1 // pred_region
      %v50 = vld [vmem:[%s3] sm:$0xff]
      %51 = vst [vmem:[#allocation2] sm:$0xff] %v50
    $region29: #{tpu_custom_call.1} parent=1 // pred_fallthru
      _
    %v52 = vld [vmem:[#allocation6] sm:$0xff]
    %v53 = vld [vmem:[#allocation6 + $0x8] sm:$0xff]
    %v54 = vld [vmem:[#allocation6 + $0x10] sm:$0xff]
    %v55 = vld [vmem:[#allocation6 + $0x18] sm:$0xff]
    %v56 = vld [vmem:[#allocation6 + $0x20] sm:$0xff]
    %v57 = vld [vmem:[#allocation6 + $0x28] sm:$0xff]
    %v58 = vld [vmem:[#allocation6 + $0x30] sm:$0xff]
    %v59 = vld [vmem:[#allocation6 + $0x38] sm:$0xff]
    %v60 = vld [vmem:[#allocation6 + $0x40] sm:$0xff]
    %v61 = vld [vmem:[#allocation6 + $0x48] sm:$0xff]
    %v62 = vld [vmem:[#allocation6 + $0x50] sm:$0xff]
    %v63 = vld [vmem:[#allocation6 + $0x58] sm:$0xff]
    %v64 = vld [vmem:[#allocation6 + $0x60] sm:$0xff]
    %v65 = vld [vmem:[#allocation6 + $0x68] sm:$0xff]
    %v66 = vld [vmem:[#allocation6 + $0x70] sm:$0xff]
    %v67 = vld [vmem:[#allocation6 + $0x78] sm:$0xff]
    %v68 = vld [vmem:[%s2] sm:$0x1]
    %v70 = vlaneseq
    %v71 = vshrl.u32 %v70, 7
    %v72 = vsub.s32 0, %v71
    %v73 = vrot.slane %v68, %v72
    %v75 = vld [vmem:[#allocation2] sm:$0xff]
    %v76 = vld [vmem:[#allocation3] sm:$0xff]
    %v77 = vtanh.pop %v75
    %78 = vmatprep.subr.mxu0 0.0
    %79 = vmatpush1.msra.mxu0 %v52
    %80 = vmatprep.subr.mxu0 0.0
    %81 = vmatpush1.msra.mxu0 %v53
    %82 = vmatprep.subr.mxu0 0.0
    %83 = vmatpush1.msra.mxu0 %v54
    %84 = vmatprep.subr.mxu0 0.0
    %85 = vmatpush1.msra.mxu0 %v55
    %86 = vmatprep.subr.mxu0 0.0
    %87 = vmatpush1.msra.mxu0 %v56
    %88 = vmatprep.subr.mxu0 0.0
    %89 = vmatpush1.msra.mxu0 %v57
    %90 = vmatprep.subr.mxu0 0.0
    %91 = vmatpush1.msra.mxu0 %v58
    %92 = vmatprep.subr.mxu0 0.0
    %93 = vmatpush1.msra.mxu0 %v59
    %94 = vmatprep.subr.mxu0 0.0
    %95 = vmatpush1.msra.mxu0 %v60
    %96 = vmatprep.subr.mxu0 0.0
    %97 = vmatpush1.msra.mxu0 %v61
    %98 = vmatprep.subr.mxu0 0.0
    %99 = vmatpush1.msra.mxu0 %v62
    %100 = vmatprep.subr.mxu0 0.0
    %101 = vmatpush1.msra.mxu0 %v63
    %102 = vmatprep.subr.mxu0 0.0
    %103 = vmatpush1.msra.mxu0 %v64
    %104 = vmatprep.subr.mxu0 0.0
    %105 = vmatpush1.msra.mxu0 %v65
    %106 = vmatprep.subr.mxu0 0.0
    %107 = vmatpush1.msra.mxu0 %v66
    %108 = vmatprep.subr.mxu0 0.0
    %109 = vmatpush1.msra.mxu0 %v67
    %110 = vmatprep.subr.mxu0 0.0
    %111 = vmatpush1.msra.mxu0 0.0
    %112 = vmatprep.subr.mxu0 0.0
    %113 = vmatpush1.msra.mxu0 0.0
    %114 = vmatprep.subr.mxu0 0.0
    %115 = vmatpush1.msra.mxu0 0.0
    %116 = vmatprep.subr.mxu0 0.0
    %117 = vmatpush1.msra.mxu0 0.0
    %118 = vmatprep.subr.mxu0 0.0
    %119 = vmatpush1.msra.mxu0 0.0
    %120 = vmatprep.subr.mxu0 0.0
    %121 = vmatpush1.msra.mxu0 0.0
    %122 = vmatprep.subr.mxu0 0.0
    %123 = vmatpush1.msra.mxu0 0.0
    %124 = vmatprep.subr.mxu0 0.0
    %125 = vmatpush1.msra.mxu0 0.0
    %126 = vmatprep.subr.mxu0 0.0
    %127 = vmatpush1.msra.mxu0 0.0
    %128 = vmatprep.subr.mxu0 0.0
    %129 = vmatpush1.msra.mxu0 0.0
    %130 = vmatprep.subr.mxu0 0.0
    %131 = vmatpush1.msra.mxu0 0.0
    %132 = vmatprep.subr.mxu0 0.0
    %133 = vmatpush1.msra.mxu0 0.0
    %134 = vmatprep.subr.mxu0 0.0
    %135 = vmatpush1.msra.mxu0 0.0
    %136 = vmatprep.subr.mxu0 0.0
    %137 = vmatpush1.msra.mxu0 0.0
    %138 = vmatprep.subr.mxu0 0.0
    %139 = vmatpush1.msra.mxu0 0.0
    %140 = vmatprep.subr.mxu0 0.0
    %141 = vmatpush1.msra.mxu0 0.0
    %142 = vmatprep.mubr.f32.mxu0 0.0
    %143 = vmatmul.mubr.f32.gmra.mrb[0].mxu0 %v77
    %v144 = vpop.f32.mrb[0].mxu0
    %v145 = vadd.f32 0.0, %v144
    %v146 = vpop.f32.mrb[0].mxu0
    %147 = vdwg.mxu0
    %v148 = vmul.f32 %v73, %v75
    %v149 = vadd.f32 %v148, %v76
    %v150 = vadd.f32 %v149, %v145
    %151 = vst [vmem:[#allocation8] sm:$0xff] %v150
    %s152 = scalar_lea.vmem [#allocation3], 8
    %v153 = vld [vmem:[%s152] sm:$0xff]
    %v154 = vtanh.pop %v150
    %155 = vmatprep.subr.mxu0 0.0
    %156 = vmatpush1.msra.mxu0 %v52
    %157 = vmatprep.subr.mxu0 0.0
    %158 = vmatpush1.msra.mxu0 %v53
    %159 = vmatprep.subr.mxu0 0.0
    %160 = vmatpush1.msra.mxu0 %v54
    %161 = vmatprep.subr.mxu0 0.0
    %162 = vmatpush1.msra.mxu0 %v55
    %163 = vmatprep.subr.mxu0 0.0
    %164 = vmatpush1.msra.mxu0 %v56
    %165 = vmatprep.subr.mxu0 0.0
    %166 = vmatpush1.msra.mxu0 %v57
    %167 = vmatprep.subr.mxu0 0.0
    %168 = vmatpush1.msra.mxu0 %v58
    %169 = vmatprep.subr.mxu0 0.0
    %170 = vmatpush1.msra.mxu0 %v59
    %171 = vmatprep.subr.mxu0 0.0
    %172 = vmatpush1.msra.mxu0 %v60
    %173 = vmatprep.subr.mxu0 0.0
    %174 = vmatpush1.msra.mxu0 %v61
    %175 = vmatprep.subr.mxu0 0.0
    %176 = vmatpush1.msra.mxu0 %v62
    %177 = vmatprep.subr.mxu0 0.0
    %178 = vmatpush1.msra.mxu0 %v63
    %179 = vmatprep.subr.mxu0 0.0
    %180 = vmatpush1.msra.mxu0 %v64
    %181 = vmatprep.subr.mxu0 0.0
    %182 = vmatpush1.msra.mxu0 %v65
    %183 = vmatprep.subr.mxu0 0.0
    %184 = vmatpush1.msra.mxu0 %v66
    %185 = vmatprep.subr.mxu0 0.0
    %186 = vmatpush1.msra.mxu0 %v67
    %187 = vmatprep.subr.mxu0 0.0
    %188 = vmatpush1.msra.mxu0 0.0
    %189 = vmatprep.subr.mxu0 0.0
    %190 = vmatpush1.msra.mxu0 0.0
    %191 = vmatprep.subr.mxu0 0.0
    %192 = vmatpush1.msra.mxu0 0.0
    %193 = vmatprep.subr.mxu0 0.0
    %194 = vmatpush1.msra.mxu0 0.0
    %195 = vmatprep.subr.mxu0 0.0
    %196 = vmatpush1.msra.mxu0 0.0
    %197 = vmatprep.subr.mxu0 0.0
    %198 = vmatpush1.msra.mxu0 0.0
    %199 = vmatprep.subr.mxu0 0.0
    %200 = vmatpush1.msra.mxu0 0.0
    %201 = vmatprep.subr.mxu0 0.0
    %202 = vmatpush1.msra.mxu0 0.0
    %203 = vmatprep.subr.mxu0 0.0
    %204 = vmatpush1.msra.mxu0 0.0
    %205 = vmatprep.subr.mxu0 0.0
    %206 = vmatpush1.msra.mxu0 0.0
    %207 = vmatprep.subr.mxu0 0.0
    %208 = vmatpush1.msra.mxu0 0.0
    %209 = vmatprep.subr.mxu0 0.0
    %210 = vmatpush1.msra.mxu0 0.0
    %211 = vmatprep.subr.mxu0 0.0
    %212 = vmatpush1.msra.mxu0 0.0
    %213 = vmatprep.subr.mxu0 0.0
    %214 = vmatpush1.msra.mxu0 0.0
    %215 = vmatprep.subr.mxu0 0.0
    %216 = vmatpush1.msra.mxu0 0.0
    %217 = vmatprep.subr.mxu0 0.0
    %218 = vmatpush1.msra.mxu0 0.0
    %219 = vmatprep.mubr.f32.mxu0 0.0
    %220 = vmatmul.mubr.f32.gmra.mrb[0].mxu0 %v154
    %v221 = vpop.f32.mrb[0].mxu0
    %v222 = vadd.f32 0.0, %v221
    %v223 = vpop.f32.mrb[0].mxu0
    %224 = vdwg.mxu0
    %v225 = vmul.f32 %v73, %v150
    %v226 = vadd.f32 %v225, %v153
    %v227 = vadd.f32 %v226, %v222
    %s228 = scalar_lea.vmem [#allocation8], 8
    %229 = vst [vmem:[%s228] sm:$0xff] %v227
    %s230 = scalar_lea.vmem [#allocation3], 16
    %v231 = vld [vmem:[%s230] sm:$0xff]
    %v232 = vtanh.pop %v227
    %233 = vmatprep.subr.mxu0 0.0
    %234 = vmatpush1.msra.mxu0 %v52
    %235 = vmatprep.subr.mxu0 0.0
    %236 = vmatpush1.msra.mxu0 %v53
    %237 = vmatprep.subr.mxu0 0.0
    %238 = vmatpush1.msra.mxu0 %v54
    %239 = vmatprep.subr.mxu0 0.0
    %240 = vmatpush1.msra.mxu0 %v55
    %241 = vmatprep.subr.mxu0 0.0
    %242 = vmatpush1.msra.mxu0 %v56
    %243 = vmatprep.subr.mxu0 0.0
    %244 = vmatpush1.msra.mxu0 %v57
    %245 = vmatprep.subr.mxu0 0.0
    %246 = vmatpush1.msra.mxu0 %v58
    %247 = vmatprep.subr.mxu0 0.0
    %248 = vmatpush1.msra.mxu0 %v59
    %249 = vmatprep.subr.mxu0 0.0
    %250 = vmatpush1.msra.mxu0 %v60
    %251 = vmatprep.subr.mxu0 0.0
    %252 = vmatpush1.msra.mxu0 %v61
    %253 = vmatprep.subr.mxu0 0.0
    %254 = vmatpush1.msra.mxu0 %v62
    %255 = vmatprep.subr.mxu0 0.0
    %256 = vmatpush1.msra.mxu0 %v63
    %257 = vmatprep.subr.mxu0 0.0
    %258 = vmatpush1.msra.mxu0 %v64
    %259 = vmatprep.subr.mxu0 0.0
    %260 = vmatpush1.msra.mxu0 %v65
    %261 = vmatprep.subr.mxu0 0.0
    %262 = vmatpush1.msra.mxu0 %v66
    %263 = vmatprep.subr.mxu0 0.0
    %264 = vmatpush1.msra.mxu0 %v67
    %265 = vmatprep.subr.mxu0 0.0
    %266 = vmatpush1.msra.mxu0 0.0
    %267 = vmatprep.subr.mxu0 0.0
    %268 = vmatpush1.msra.mxu0 0.0
    %269 = vmatprep.subr.mxu0 0.0
    %270 = vmatpush1.msra.mxu0 0.0
    %271 = vmatprep.subr.mxu0 0.0
    %272 = vmatpush1.msra.mxu0 0.0
    %273 = vmatprep.subr.mxu0 0.0
    %274 = vmatpush1.msra.mxu0 0.0
    %275 = vmatprep.subr.mxu0 0.0
    %276 = vmatpush1.msra.mxu0 0.0
    %277 = vmatprep.subr.mxu0 0.0
    %278 = vmatpush1.msra.mxu0 0.0
    %279 = vmatprep.subr.mxu0 0.0
    %280 = vmatpush1.msra.mxu0 0.0
    %281 = vmatprep.subr.mxu0 0.0
    %282 = vmatpush1.msra.mxu0 0.0
    %283 = vmatprep.subr.mxu0 0.0
    %284 = vmatpush1.msra.mxu0 0.0
    %285 = vmatprep.subr.mxu0 0.0
    %286 = vmatpush1.msra.mxu0 0.0
    %287 = vmatprep.subr.mxu0 0.0
    %288 = vmatpush1.msra.mxu0 0.0
    %289 = vmatprep.subr.mxu0 0.0
    %290 = vmatpush1.msra.mxu0 0.0
    %291 = vmatprep.subr.mxu0 0.0
    %292 = vmatpush1.msra.mxu0 0.0
    %293 = vmatprep.subr.mxu0 0.0
    %294 = vmatpush1.msra.mxu0 0.0
    %295 = vmatprep.subr.mxu0 0.0
    %296 = vmatpush1.msra.mxu0 0.0
    %297 = vmatprep.mubr.f32.mxu0 0.0
    %298 = vmatmul.mubr.f32.gmra.mrb[0].mxu0 %v232
    %v299 = vpop.f32.mrb[0].mxu0
    %v300 = vadd.f32 0.0, %v299
    %v301 = vpop.f32.mrb[0].mxu0
    %302 = vdwg.mxu0
    %v303 = vmul.f32 %v73, %v227
    %v304 = vadd.f32 %v303, %v231
    %v305 = vadd.f32 %v304, %v300
    %s306 = scalar_lea.vmem [#allocation8], 16
    %307 = vst [vmem:[%s306] sm:$0xff] %v305
    %s308 = scalar_lea.vmem [#allocation3], 24
    %v309 = vld [vmem:[%s308] sm:$0xff]
    %v310 = vtanh.pop %v305
    %311 = vmatprep.subr.mxu0 0.0
    %312 = vmatpush1.msra.mxu0 %v52
    %313 = vmatprep.subr.mxu0 0.0
    %314 = vmatpush1.msra.mxu0 %v53
    %315 = vmatprep.subr.mxu0 0.0
    %316 = vmatpush1.msra.mxu0 %v54
    %317 = vmatprep.subr.mxu0 0.0
    %318 = vmatpush1.msra.mxu0 %v55
    %319 = vmatprep.subr.mxu0 0.0
    %320 = vmatpush1.msra.mxu0 %v56
    %321 = vmatprep.subr.mxu0 0.0
    %322 = vmatpush1.msra.mxu0 %v57
    %323 = vmatprep.subr.mxu0 0.0
    %324 = vmatpush1.msra.mxu0 %v58
    %325 = vmatprep.subr.mxu0 0.0
    %326 = vmatpush1.msra.mxu0 %v59
    %327 = vmatprep.subr.mxu0 0.0
    %328 = vmatpush1.msra.mxu0 %v60
    %329 = vmatprep.subr.mxu0 0.0
    %330 = vmatpush1.msra.mxu0 %v61
    %331 = vmatprep.subr.mxu0 0.0
    %332 = vmatpush1.msra.mxu0 %v62
    %333 = vmatprep.subr.mxu0 0.0
    %334 = vmatpush1.msra.mxu0 %v63
    %335 = vmatprep.subr.mxu0 0.0
    %336 = vmatpush1.msra.mxu0 %v64
    %337 = vmatprep.subr.mxu0 0.0
    %338 = vmatpush1.msra.mxu0 %v65
    %339 = vmatprep.subr.mxu0 0.0
    %340 = vmatpush1.msra.mxu0 %v66
    %341 = vmatprep.subr.mxu0 0.0
    %342 = vmatpush1.msra.mxu0 %v67
    %343 = vmatprep.subr.mxu0 0.0
    %344 = vmatpush1.msra.mxu0 0.0
    %345 = vmatprep.subr.mxu0 0.0
    %346 = vmatpush1.msra.mxu0 0.0
    %347 = vmatprep.subr.mxu0 0.0
    %348 = vmatpush1.msra.mxu0 0.0
    %349 = vmatprep.subr.mxu0 0.0
    %350 = vmatpush1.msra.mxu0 0.0
    %351 = vmatprep.subr.mxu0 0.0
    %352 = vmatpush1.msra.mxu0 0.0
    %353 = vmatprep.subr.mxu0 0.0
    %354 = vmatpush1.msra.mxu0 0.0
    %355 = vmatprep.subr.mxu0 0.0
    %356 = vmatpush1.msra.mxu0 0.0
    %357 = vmatprep.subr.mxu0 0.0
    %358 = vmatpush1.msra.mxu0 0.0
    %359 = vmatprep.subr.mxu0 0.0
    %360 = vmatpush1.msra.mxu0 0.0
    %361 = vmatprep.subr.mxu0 0.0
    %362 = vmatpush1.msra.mxu0 0.0
    %363 = vmatprep.subr.mxu0 0.0
    %364 = vmatpush1.msra.mxu0 0.0
    %365 = vmatprep.subr.mxu0 0.0
    %366 = vmatpush1.msra.mxu0 0.0
    %367 = vmatprep.subr.mxu0 0.0
    %368 = vmatpush1.msra.mxu0 0.0
    %369 = vmatprep.subr.mxu0 0.0
    %370 = vmatpush1.msra.mxu0 0.0
    %371 = vmatprep.subr.mxu0 0.0
    %372 = vmatpush1.msra.mxu0 0.0
    %373 = vmatprep.subr.mxu0 0.0
    %374 = vmatpush1.msra.mxu0 0.0
    %375 = vmatprep.mubr.f32.mxu0 0.0
    %376 = vmatmul.mubr.f32.gmra.mrb[0].mxu0 %v310
    %v377 = vpop.f32.mrb[0].mxu0
    %v378 = vadd.f32 0.0, %v377
    %v379 = vpop.f32.mrb[0].mxu0
    %380 = vdwg.mxu0
    %v381 = vmul.f32 %v73, %v305
    %v382 = vadd.f32 %v381, %v309
    %v383 = vadd.f32 %v382, %v378
    %s384 = scalar_lea.vmem [#allocation8], 24
    %385 = vst [vmem:[%s384] sm:$0xff] %v383
    %s386 = scalar_lea.vmem [#allocation3], 32
    %v387 = vld [vmem:[%s386] sm:$0xff]
    %v388 = vtanh.pop %v383
    %389 = vmatprep.subr.mxu0 0.0
    %390 = vmatpush1.msra.mxu0 %v52
    %391 = vmatprep.subr.mxu0 0.0
    %392 = vmatpush1.msra.mxu0 %v53
    %393 = vmatprep.subr.mxu0 0.0
    %394 = vmatpush1.msra.mxu0 %v54
    %395 = vmatprep.subr.mxu0 0.0
    %396 = vmatpush1.msra.mxu0 %v55
    %397 = vmatprep.subr.mxu0 0.0
    %398 = vmatpush1.msra.mxu0 %v56
    %399 = vmatprep.subr.mxu0 0.0
    %400 = vmatpush1.msra.mxu0 %v57
    %401 = vmatprep.subr.mxu0 0.0
    %402 = vmatpush1.msra.mxu0 %v58
    %403 = vmatprep.subr.mxu0 0.0
    %404 = vmatpush1.msra.mxu0 %v59
    %405 = vmatprep.subr.mxu0 0.0
    %406 = vmatpush1.msra.mxu0 %v60
    %407 = vmatprep.subr.mxu0 0.0
    %408 = vmatpush1.msra.mxu0 %v61
    %409 = vmatprep.subr.mxu0 0.0
    %410 = vmatpush1.msra.mxu0 %v62
    %411 = vmatprep.subr.mxu0 0.0
    %412 = vmatpush1.msra.mxu0 %v63
    %413 = vmatprep.subr.mxu0 0.0
    %414 = vmatpush1.msra.mxu0 %v64
    %415 = vmatprep.subr.mxu0 0.0
    %416 = vmatpush1.msra.mxu0 %v65
    %417 = vmatprep.subr.mxu0 0.0
    %418 = vmatpush1.msra.mxu0 %v66
    %419 = vmatprep.subr.mxu0 0.0
    %420 = vmatpush1.msra.mxu0 %v67
    %421 = vmatprep.subr.mxu0 0.0
    %422 = vmatpush1.msra.mxu0 0.0
    %423 = vmatprep.subr.mxu0 0.0
    %424 = vmatpush1.msra.mxu0 0.0
    %425 = vmatprep.subr.mxu0 0.0
    %426 = vmatpush1.msra.mxu0 0.0
    %427 = vmatprep.subr.mxu0 0.0
    %428 = vmatpush1.msra.mxu0 0.0
    %429 = vmatprep.subr.mxu0 0.0
    %430 = vmatpush1.msra.mxu0 0.0
    %431 = vmatprep.subr.mxu0 0.0
    %432 = vmatpush1.msra.mxu0 0.0
    %433 = vmatprep.subr.mxu0 0.0
    %434 = vmatpush1.msra.mxu0 0.0
    %435 = vmatprep.subr.mxu0 0.0
    %436 = vmatpush1.msra.mxu0 0.0
    %437 = vmatprep.subr.mxu0 0.0
    %438 = vmatpush1.msra.mxu0 0.0
    %439 = vmatprep.subr.mxu0 0.0
    %440 = vmatpush1.msra.mxu0 0.0
    %441 = vmatprep.subr.mxu0 0.0
    %442 = vmatpush1.msra.mxu0 0.0
    %443 = vmatprep.subr.mxu0 0.0
    %444 = vmatpush1.msra.mxu0 0.0
    %445 = vmatprep.subr.mxu0 0.0
    %446 = vmatpush1.msra.mxu0 0.0
    %447 = vmatprep.subr.mxu0 0.0
    %448 = vmatpush1.msra.mxu0 0.0
    %449 = vmatprep.subr.mxu0 0.0
    %450 = vmatpush1.msra.mxu0 0.0
    %451 = vmatprep.subr.mxu0 0.0
    %452 = vmatpush1.msra.mxu0 0.0
    %453 = vmatprep.mubr.f32.mxu0 0.0
    %454 = vmatmul.mubr.f32.gmra.mrb[0].mxu0 %v388
    %v455 = vpop.f32.mrb[0].mxu0
    %v456 = vadd.f32 0.0, %v455
    %v457 = vpop.f32.mrb[0].mxu0
    %458 = vdwg.mxu0
    %v459 = vmul.f32 %v73, %v383
    %v460 = vadd.f32 %v459, %v387
    %v461 = vadd.f32 %v460, %v456
    %s462 = scalar_lea.vmem [#allocation8], 32
    %463 = vst [vmem:[%s462] sm:$0xff] %v461
    %s464 = scalar_lea.vmem [#allocation3], 40
    %v465 = vld [vmem:[%s464] sm:$0xff]
    %v466 = vtanh.pop %v461
    %467 = vmatprep.subr.mxu0 0.0
    %468 = vmatpush1.msra.mxu0 %v52
    %469 = vmatprep.subr.mxu0 0.0
    %470 = vmatpush1.msra.mxu0 %v53
    %471 = vmatprep.subr.mxu0 0.0
    %472 = vmatpush1.msra.mxu0 %v54
    %473 = vmatprep.subr.mxu0 0.0
    %474 = vmatpush1.msra.mxu0 %v55
    %475 = vmatprep.subr.mxu0 0.0
    %476 = vmatpush1.msra.mxu0 %v56
    %477 = vmatprep.subr.mxu0 0.0
    %478 = vmatpush1.msra.mxu0 %v57
    %479 = vmatprep.subr.mxu0 0.0
    %480 = vmatpush1.msra.mxu0 %v58
    %481 = vmatprep.subr.mxu0 0.0
    %482 = vmatpush1.msra.mxu0 %v59
    %483 = vmatprep.subr.mxu0 0.0
    %484 = vmatpush1.msra.mxu0 %v60
    %485 = vmatprep.subr.mxu0 0.0
    %486 = vmatpush1.msra.mxu0 %v61
    %487 = vmatprep.subr.mxu0 0.0
    %488 = vmatpush1.msra.mxu0 %v62
    %489 = vmatprep.subr.mxu0 0.0
    %490 = vmatpush1.msra.mxu0 %v63
    %491 = vmatprep.subr.mxu0 0.0
    %492 = vmatpush1.msra.mxu0 %v64
    %493 = vmatprep.subr.mxu0 0.0
    %494 = vmatpush1.msra.mxu0 %v65
    %495 = vmatprep.subr.mxu0 0.0
    %496 = vmatpush1.msra.mxu0 %v66
    %497 = vmatprep.subr.mxu0 0.0
    %498 = vmatpush1.msra.mxu0 %v67
    %499 = vmatprep.subr.mxu0 0.0
    %500 = vmatpush1.msra.mxu0 0.0
    %501 = vmatprep.subr.mxu0 0.0
    %502 = vmatpush1.msra.mxu0 0.0
    %503 = vmatprep.subr.mxu0 0.0
    %504 = vmatpush1.msra.mxu0 0.0
    %505 = vmatprep.subr.mxu0 0.0
    %506 = vmatpush1.msra.mxu0 0.0
    %507 = vmatprep.subr.mxu0 0.0
    %508 = vmatpush1.msra.mxu0 0.0
    %509 = vmatprep.subr.mxu0 0.0
    %510 = vmatpush1.msra.mxu0 0.0
    %511 = vmatprep.subr.mxu0 0.0
    %512 = vmatpush1.msra.mxu0 0.0
    %513 = vmatprep.subr.mxu0 0.0
    %514 = vmatpush1.msra.mxu0 0.0
    %515 = vmatprep.subr.mxu0 0.0
    %516 = vmatpush1.msra.mxu0 0.0
    %517 = vmatprep.subr.mxu0 0.0
    %518 = vmatpush1.msra.mxu0 0.0
    %519 = vmatprep.subr.mxu0 0.0
    %520 = vmatpush1.msra.mxu0 0.0
    %521 = vmatprep.subr.mxu0 0.0
    %522 = vmatpush1.msra.mxu0 0.0
    %523 = vmatprep.subr.mxu0 0.0
    %524 = vmatpush1.msra.mxu0 0.0
    %525 = vmatprep.subr.mxu0 0.0
    %526 = vmatpush1.msra.mxu0 0.0
    %527 = vmatprep.subr.mxu0 0.0
    %528 = vmatpush1.msra.mxu0 0.0
    %529 = vmatprep.subr.mxu0 0.0
    %530 = vmatpush1.msra.mxu0 0.0
    %531 = vmatprep.mubr.f32.mxu0 0.0
    %532 = vmatmul.mubr.f32.gmra.mrb[0].mxu0 %v466
    %v533 = vpop.f32.mrb[0].mxu0
    %v534 = vadd.f32 0.0, %v533
    %v535 = vpop.f32.mrb[0].mxu0
    %536 = vdwg.mxu0
    %v537 = vmul.f32 %v73, %v461
    %v538 = vadd.f32 %v537, %v465
    %v539 = vadd.f32 %v538, %v534
    %s540 = scalar_lea.vmem [#allocation8], 40
    %541 = vst [vmem:[%s540] sm:$0xff] %v539
    %s542 = scalar_lea.vmem [#allocation3], 48
    %v543 = vld [vmem:[%s542] sm:$0xff]
    %v544 = vtanh.pop %v539
    %545 = vmatprep.subr.mxu0 0.0
    %546 = vmatpush1.msra.mxu0 %v52
    %547 = vmatprep.subr.mxu0 0.0
    %548 = vmatpush1.msra.mxu0 %v53
    %549 = vmatprep.subr.mxu0 0.0
    %550 = vmatpush1.msra.mxu0 %v54
    %551 = vmatprep.subr.mxu0 0.0
    %552 = vmatpush1.msra.mxu0 %v55
    %553 = vmatprep.subr.mxu0 0.0
    %554 = vmatpush1.msra.mxu0 %v56
    %555 = vmatprep.subr.mxu0 0.0
    %556 = vmatpush1.msra.mxu0 %v57
    %557 = vmatprep.subr.mxu0 0.0
    %558 = vmatpush1.msra.mxu0 %v58
    %559 = vmatprep.subr.mxu0 0.0
    %560 = vmatpush1.msra.mxu0 %v59
    %561 = vmatprep.subr.mxu0 0.0
    %562 = vmatpush1.msra.mxu0 %v60
    %563 = vmatprep.subr.mxu0 0.0
    %564 = vmatpush1.msra.mxu0 %v61
    %565 = vmatprep.subr.mxu0 0.0
    %566 = vmatpush1.msra.mxu0 %v62
    %567 = vmatprep.subr.mxu0 0.0
    %568 = vmatpush1.msra.mxu0 %v63
    %569 = vmatprep.subr.mxu0 0.0
    %570 = vmatpush1.msra.mxu0 %v64
    %571 = vmatprep.subr.mxu0 0.0
    %572 = vmatpush1.msra.mxu0 %v65
    %573 = vmatprep.subr.mxu0 0.0
    %574 = vmatpush1.msra.mxu0 %v66
    %575 = vmatprep.subr.mxu0 0.0
    %576 = vmatpush1.msra.mxu0 %v67
    %577 = vmatprep.subr.mxu0 0.0
    %578 = vmatpush1.msra.mxu0 0.0
    %579 = vmatprep.subr.mxu0 0.0
    %580 = vmatpush1.msra.mxu0 0.0
    %581 = vmatprep.subr.mxu0 0.0
    %582 = vmatpush1.msra.mxu0 0.0
    %583 = vmatprep.subr.mxu0 0.0
    %584 = vmatpush1.msra.mxu0 0.0
    %585 = vmatprep.subr.mxu0 0.0
    %586 = vmatpush1.msra.mxu0 0.0
    %587 = vmatprep.subr.mxu0 0.0
    %588 = vmatpush1.msra.mxu0 0.0
    %589 = vmatprep.subr.mxu0 0.0
    %590 = vmatpush1.msra.mxu0 0.0
    %591 = vmatprep.subr.mxu0 0.0
    %592 = vmatpush1.msra.mxu0 0.0
    %593 = vmatprep.subr.mxu0 0.0
    %594 = vmatpush1.msra.mxu0 0.0
    %595 = vmatprep.subr.mxu0 0.0
    %596 = vmatpush1.msra.mxu0 0.0
    %597 = vmatprep.subr.mxu0 0.0
    %598 = vmatpush1.msra.mxu0 0.0
    %599 = vmatprep.subr.mxu0 0.0
    %600 = vmatpush1.msra.mxu0 0.0
    %601 = vmatprep.subr.mxu0 0.0
    %602 = vmatpush1.msra.mxu0 0.0
    %603 = vmatprep.subr.mxu0 0.0
    %604 = vmatpush1.msra.mxu0 0.0
    %605 = vmatprep.subr.mxu0 0.0
    %606 = vmatpush1.msra.mxu0 0.0
    %607 = vmatprep.subr.mxu0 0.0
    %608 = vmatpush1.msra.mxu0 0.0
    %609 = vmatprep.mubr.f32.mxu0 0.0
    %610 = vmatmul.mubr.f32.gmra.mrb[0].mxu0 %v544
    %v611 = vpop.f32.mrb[0].mxu0
    %v612 = vadd.f32 0.0, %v611
    %v613 = vpop.f32.mrb[0].mxu0
    %614 = vdwg.mxu0
    %v615 = vmul.f32 %v73, %v539
    %v616 = vadd.f32 %v615, %v543
    %v617 = vadd.f32 %v616, %v612
    %s618 = scalar_lea.vmem [#allocation8], 48
    %619 = vst [vmem:[%s618] sm:$0xff] %v617
    %s620 = scalar_lea.vmem [#allocation3], 56
    %v621 = vld [vmem:[%s620] sm:$0xff]
    %v622 = vtanh.pop %v617
    %623 = vmatprep.subr.mxu0 0.0
    %624 = vmatpush1.msra.mxu0 %v52
    %625 = vmatprep.subr.mxu0 0.0
    %626 = vmatpush1.msra.mxu0 %v53
    %627 = vmatprep.subr.mxu0 0.0
    %628 = vmatpush1.msra.mxu0 %v54
    %629 = vmatprep.subr.mxu0 0.0
    %630 = vmatpush1.msra.mxu0 %v55
    %631 = vmatprep.subr.mxu0 0.0
    %632 = vmatpush1.msra.mxu0 %v56
    %633 = vmatprep.subr.mxu0 0.0
    %634 = vmatpush1.msra.mxu0 %v57
    %635 = vmatprep.subr.mxu0 0.0
    %636 = vmatpush1.msra.mxu0 %v58
    %637 = vmatprep.subr.mxu0 0.0
    %638 = vmatpush1.msra.mxu0 %v59
    %639 = vmatprep.subr.mxu0 0.0
    %640 = vmatpush1.msra.mxu0 %v60
    %641 = vmatprep.subr.mxu0 0.0
    %642 = vmatpush1.msra.mxu0 %v61
    %643 = vmatprep.subr.mxu0 0.0
    %644 = vmatpush1.msra.mxu0 %v62
    %645 = vmatprep.subr.mxu0 0.0
    %646 = vmatpush1.msra.mxu0 %v63
    %647 = vmatprep.subr.mxu0 0.0
    %648 = vmatpush1.msra.mxu0 %v64
    %649 = vmatprep.subr.mxu0 0.0
    %650 = vmatpush1.msra.mxu0 %v65
    %651 = vmatprep.subr.mxu0 0.0
    %652 = vmatpush1.msra.mxu0 %v66
    %653 = vmatprep.subr.mxu0 0.0
    %654 = vmatpush1.msra.mxu0 %v67
    %655 = vmatprep.subr.mxu0 0.0
    %656 = vmatpush1.msra.mxu0 0.0
    %657 = vmatprep.subr.mxu0 0.0
    %658 = vmatpush1.msra.mxu0 0.0
    %659 = vmatprep.subr.mxu0 0.0
    %660 = vmatpush1.msra.mxu0 0.0
    %661 = vmatprep.subr.mxu0 0.0
    %662 = vmatpush1.msra.mxu0 0.0
    %663 = vmatprep.subr.mxu0 0.0
    %664 = vmatpush1.msra.mxu0 0.0
    %665 = vmatprep.subr.mxu0 0.0
    %666 = vmatpush1.msra.mxu0 0.0
    %667 = vmatprep.subr.mxu0 0.0
    %668 = vmatpush1.msra.mxu0 0.0
    %669 = vmatprep.subr.mxu0 0.0
    %670 = vmatpush1.msra.mxu0 0.0
    %671 = vmatprep.subr.mxu0 0.0
    %672 = vmatpush1.msra.mxu0 0.0
    %673 = vmatprep.subr.mxu0 0.0
    %674 = vmatpush1.msra.mxu0 0.0
    %675 = vmatprep.subr.mxu0 0.0
    %676 = vmatpush1.msra.mxu0 0.0
    %677 = vmatprep.subr.mxu0 0.0
    %678 = vmatpush1.msra.mxu0 0.0
    %679 = vmatprep.subr.mxu0 0.0
    %680 = vmatpush1.msra.mxu0 0.0
    %681 = vmatprep.subr.mxu0 0.0
    %682 = vmatpush1.msra.mxu0 0.0
    %683 = vmatprep.subr.mxu0 0.0
    %684 = vmatpush1.msra.mxu0 0.0
    %685 = vmatprep.subr.mxu0 0.0
    %686 = vmatpush1.msra.mxu0 0.0
    %687 = vmatprep.mubr.f32.mxu0 0.0
    %688 = vmatmul.mubr.f32.gmra.mrb[0].mxu0 %v622
    %v689 = vpop.f32.mrb[0].mxu0
    %v690 = vadd.f32 0.0, %v689
    %v691 = vpop.f32.mrb[0].mxu0
    %692 = vdwg.mxu0
    %v693 = vmul.f32 %v73, %v617
    %v694 = vadd.f32 %v693, %v621
    %v695 = vadd.f32 %v694, %v690
    %s696 = scalar_lea.vmem [#allocation8], 56
    %697 = vst [vmem:[%s696] sm:$0xff] %v695
    %698 = vst [vmem:[#allocation2] sm:$0xff] %v695
    // Predicated region
    $region30: #{tpu_custom_call.1} parent=1 // pred_check
      _
    $region31: #{tpu_custom_call.1} parent=1 // pred_check_branch
      %700 = sbr.rel (0) target = $region33
    $region32: #{tpu_custom_call.1} parent=1 // pred_region
      %s702 = ssub.s32 1024, 1024
      %703 = vsyncadd [#allocation5], %s702
      %s704 = sshll.u32 [#allocation8], 4
      %s705 = int_to_ptr.vmem [resolvable:$true] %s704
      %710 = dma.vmem_to_hbm [thread:$0]  %s705, 1024, %s4, [#allocation5], 128, 128, 8
    $region33: #{tpu_custom_call.1} parent=1 // pred_fallthru
      _
    // Predicated region
    $region34: #{tpu_custom_call.1} parent=1 // pred_check
      _
    $region35: #{tpu_custom_call.1} parent=1 // pred_check_branch
      %712 = sbr.rel (0) target = $region37
    $region36: #{tpu_custom_call.1} parent=1 // pred_region
      %713 = dma.done [#allocation5], 1024
    $region37: #{tpu_custom_call.1} parent=1 // pred_fallthru
      _
    %714 = vsyncpa [#allocation4], 1
    %715 = vsyncpa [#allocation7], 1
    %716 = vsyncpa [#allocation5], 1

</llo_original>
